<compile_context>
chip_gen: v5e
topology: v5e:2x2
jax: 0.10.0
libtpu: 0.0.40
codegen_flags: <defaults>
</compile_context>

<pallas_src>
import jax
import jax.numpy as jnp
from jax.experimental import pallas as pl
from jax.experimental.pallas import tpu as pltpu


def lstm_recurrence_kernel(maxlen_ref, len_ref, x_ref, w_ih_ref, b_ref, w_hh_ref,
                           h_out_ref, h_scr, c_scr, xw_scr):
    """One time-chunk of the packed-LSTM recurrence for one batch shard.

    maxlen_ref : (1,)           int32 SMEM  max valid length (scalar prefetch)
    len_ref    : (Bb, 1)        int32       valid sequence length per row
    x_ref      : (1, TC*Bb, E)  bf16        embedded inputs for this chunk (time-major rows)
    w_ih_ref   : (E, 4*Hp)      bf16        input->gates weights (gate slabs lane-aligned)
    b_ref      : (1, 4*Hp)      f32         combined bias b_ih + b_hh
    w_hh_ref   : (Hp, 4*Hp)     bf16        recurrent weights
    h_out_ref  : (Bb, Hp)       f32         last hidden state (written on final chunk)
    h_scr/c_scr: (Bb, Hp)       f32         persistent LSTM state across time chunks
    xw_scr     : (TC*Bb, 4*Hp)  f32         per-chunk x @ W_ih + b
    """
    t_chunk = pl.program_id(1)
    n_chunks = pl.num_programs(1)
    Bb, Hp = h_scr.shape
    TC = x_ref.shape[1] // Bb
    t0 = t_chunk * TC

    @pl.when(t_chunk == 0)
    def _():
        h_scr[...] = jnp.zeros_like(h_scr)
        c_scr[...] = jnp.zeros_like(c_scr)

    # Skip chunks that lie entirely past the longest sequence (pack_padded tail).
    @pl.when(t0 < maxlen_ref[0])
    def _():
        # Input projection for the whole chunk: one wide MXU matmul, off the serial path.
        xw_scr[...] = (jnp.dot(x_ref[0], w_ih_ref[...],
                               preferred_element_type=jnp.float32) + b_ref[...])

        lengths = len_ref[...]          # (Bb, 1) int32
        w_hh = w_hh_ref[...]            # (Hp, 4*Hp) bf16, loop-invariant

        def sigmoid(z):
            # tanh form: one EUP pass (+ cheap VPU scale/offset) instead of exp + recip.
            return 0.5 * jnp.tanh(0.5 * z) + 0.5

        def step(s, carry):
            h = h_scr[...]
            c = c_scr[...]
            row = pl.multiple_of(s * Bb, Bb)
            # Only the recurrent matmul sits on the serially-dependent critical path.
            gates = xw_scr[pl.ds(row, Bb), :] + jnp.dot(
                h.astype(jnp.bfloat16), w_hh, preferred_element_type=jnp.float32)
            # PyTorch gate order i, f, g, o; each slab is a lane-aligned Hp block.
            i = sigmoid(gates[:, 0 * Hp:1 * Hp])
            f = sigmoid(gates[:, 1 * Hp:2 * Hp])
            g = jnp.tanh(gates[:, 2 * Hp:3 * Hp])
            o = sigmoid(gates[:, 3 * Hp:4 * Hp])
            c_new = f * c + i * g
            h_new = o * jnp.tanh(c_new)
            # pack_padded_sequence: only advance state while t < length[b]
            live = lengths > (t0 + s)   # (Bb, 1) bool
            h_scr[...] = jnp.where(live, h_new, h)
            c_scr[...] = jnp.where(live, c_new, c)
            return carry

        jax.lax.fori_loop(0, TC, step, 0, unroll=min(TC, 8))

    @pl.when(t_chunk == n_chunks - 1)
    def _():
        h_out_ref[...] = h_scr[...]


def _round_up(x, m):
    return ((x + m - 1) // m) * m


def _tpu_target():
    """(tensorcores_per_chip, physical_vmem_bytes) — static, queried at trace time."""
    kind = ""
    try:
        kind = jax.devices()[0].device_kind.lower()
    except Exception:
        pass
    multi_tc = ("v7" in kind) or ("7x" in kind)
    vmem_bytes = 0
    try:
        vmem_bytes = int(pltpu.get_tpu_info().vmem_capacity_bytes)
    except Exception:
        vmem_bytes = 0
    if vmem_bytes <= 0:
        vmem_bytes = (64 << 20) if multi_tc else (128 << 20)
    return (2 if multi_tc else 1), vmem_bytes


def _prepare_padded_params(params, Hp):
    """Pad each of the 4 gate blocks from width H to Hp (lane-aligned); weights -> bf16."""
    E, four_h = params["w_ih"].shape
    H = four_h // 4
    w_ih4 = params["w_ih"].reshape(E, 4, H)
    w_hh4 = params["w_hh"].reshape(H, 4, H)
    b4 = params["b"].reshape(1, 4, H)
    w_ih_p = jnp.zeros((E, 4, Hp), jnp.float32).at[:, :, :H].set(w_ih4)
    w_hh_p = jnp.zeros((Hp, 4, Hp), jnp.float32).at[:H, :, :H].set(w_hh4)
    b_p = jnp.zeros((1, 4, Hp), jnp.float32).at[:, :, :H].set(b4)
    return (w_ih_p.reshape(E, 4 * Hp).astype(jnp.bfloat16),
            w_hh_p.reshape(Hp, 4 * Hp).astype(jnp.bfloat16),
            b_p.reshape(1, 4 * Hp))


def lstm_classifier_forward(word_id, lengths, params):
    """word_id: (B, T) int32, lengths: (B,) int32. Returns logits (B, 2)."""
    B, T = word_id.shape
    E = params["embedding"].shape[1]
    H = params["w_hh"].shape[0]

    num_tc, phys_vmem = _tpu_target()

    Hp = _round_up(H, 128)                       # lane-align the four gate slabs
    Bp = _round_up(B, 8)                         # sublane-align the batch
    # Split the batch across TensorCores only on multi-TC chips (v7x); on v5e/v6e a
    # split would just serialize two half-batch recurrences for zero gain.
    S = 2 if (num_tc >= 2 and Bp >= 16 and Bp % 16 == 0) else 1
    Bb = Bp // S

    # Derive the time-chunk length TC from a per-generation VMEM budget.
    # Per-timestep bytes: xw scratch row-block (f32, single buffer) + double-buffered
    # bf16 x stream. Fixed: weights (constant index map -> single buffer), bias,
    # h/c scratch, output block, lengths tile.
    budget = (40 << 20) if phys_vmem <= (64 << 20) else (96 << 20)
    fixed = (E * 4 * Hp * 2            # w_ih (bf16)
             + Hp * 4 * Hp * 2         # w_hh (bf16)
             + 4 * Hp * 4              # bias (f32)
             + 2 * Bb * Hp * 4         # h, c scratch (f32)
             + 2 * Bb * Hp * 4         # double-buffered output block
             + 2 * Bb * 128 * 4)       # lengths tile (lane-padded)
    per_t = Bb * 4 * Hp * 4 + 2 * Bb * E * 2
    tc_budget = max(1, (budget - fixed) // per_t)
    TC = int(max(1, min(T, tc_budget)))
    Tp = _round_up(T, TC)
    n_chunks = Tp // TC

    w_ih_p, w_hh_p, b_p = _prepare_padded_params(params, Hp)

    # Pad the tiny int32 ids/lengths (NOT the big activations), then gather time-major
    # so x is born padded; shard-major layout => one contiguous DMA per chunk.
    wid_p = jnp.zeros((Bp, Tp), jnp.int32).at[:B, :T].set(word_id.astype(jnp.int32))
    len_p = jnp.zeros((Bp, 1), jnp.int32).at[:B, 0].set(lengths.astype(jnp.int32))
    maxlen = jnp.max(len_p).reshape(1).astype(jnp.int32)

    x = params["embedding"][wid_p.T].astype(jnp.bfloat16)       # (Tp, Bp, E)
    x = x.reshape(Tp, S, Bb, E).transpose(1, 0, 2, 3)           # (S, Tp, Bb, E)
    x = x.reshape(S, Tp * Bb, E)                                # shard-major chunk rows

    est = fixed + TC * per_t
    vmem_cap = (48 << 20) if phys_vmem <= (64 << 20) else (100 << 20)
    vmem_limit = int(min(max(est + est // 4, 16 << 20), vmem_cap))

    grid_spec = pltpu.PrefetchScalarGridSpec(
        num_scalar_prefetch=1,                                   # max(length) -> SMEM
        grid=(S, n_chunks),
        in_specs=[
            pl.BlockSpec((Bb, 1), lambda b, t, ml: (b, 0)),               # lengths
            pl.BlockSpec((1, TC * Bb, E), lambda b, t, ml: (b, t, 0)),    # x chunk (bf16)
            pl.BlockSpec((E, 4 * Hp), lambda b, t, ml: (0, 0)),           # W_ih (bf16)
            pl.BlockSpec((1, 4 * Hp), lambda b, t, ml: (0, 0)),           # bias (f32)
            pl.BlockSpec((Hp, 4 * Hp), lambda b, t, ml: (0, 0)),          # W_hh (bf16)
        ],
        out_specs=pl.BlockSpec((Bb, Hp), lambda b, t, ml: (b, 0)),        # h_n (lane-dense)
        scratch_shapes=[
            pltpu.VMEM((Bb, Hp), jnp.float32),            # h
            pltpu.VMEM((Bb, Hp), jnp.float32),            # c
            pltpu.VMEM((TC * Bb, 4 * Hp), jnp.float32),   # per-chunk x @ W_ih + b
        ],
    )

    h_n = pl.pallas_call(
        lstm_recurrence_kernel,
        out_shape=jax.ShapeDtypeStruct((Bp, Hp), jnp.float32),
        grid_spec=grid_spec,
        compiler_params=pltpu.CompilerParams(
            dimension_semantics=("parallel", "arbitrary"),   # batch shards ||, time serial
            vmem_limit_bytes=vmem_limit),
    )(maxlen, len_p, x, w_ih_p, b_p, w_hh_p)

    # Epilogue outside the kernel: output dropout is identity (eval); Linear(H, 2).
    return jnp.dot(h_n[:B, :H], params["w_out"],
                   preferred_element_type=jnp.float32) + params["b_out"]


def ref_forward(word_id, lengths, params):
    """Pure-JAX reference (lax.scan) mirroring packed-LSTM semantics (same bf16 casts)."""
    H = params["w_hh"].shape[0]
    w_ih = params["w_ih"].astype(jnp.bfloat16)
    w_hh = params["w_hh"].astype(jnp.bfloat16)
    b = params["b"]
    emb = params["embedding"][word_id].astype(jnp.bfloat16)          # (B, T, E)
    x = jnp.transpose(emb, (1, 0, 2))                                # (T, B, E)
    T, B, _ = x.shape

    def step(carry, inp):
        h, c = carry
        x_t, t = inp
        xg = jnp.dot(x_t, w_ih, preferred_element_type=jnp.float32) + b
        gates = xg + jnp.dot(h.astype(jnp.bfloat16), w_hh,
                             preferred_element_type=jnp.float32)
        i = jax.nn.sigmoid(gates[:, 0 * H:1 * H])
        f = jax.nn.sigmoid(gates[:, 1 * H:2 * H])
        g = jnp.tanh(gates[:, 2 * H:3 * H])
        o = jax.nn.sigmoid(gates[:, 3 * H:4 * H])
        c_new = f * c + i * g
        h_new = o * jnp.tanh(c_new)
        m = (lengths > t)[:, None]
        return (jnp.where(m, h_new, h), jnp.where(m, c_new, c)), None

    h0 = jnp.zeros((B, H), jnp.float32)
    (h, _), _ = jax.lax.scan(step, (h0, h0), (x, jnp.arange(T)))
    return jnp.dot(h, params["w_out"]) + params["b_out"]


def init_params(key, vocab, embed_dim, hidden_dim):
    """Deterministic synthetic params matching nn.Embedding / nn.LSTM / nn.Linear shapes."""
    ks = jax.random.split(key, 8)
    s = 1.0 / jnp.sqrt(hidden_dim)
    u = lambda k, shape: jax.random.uniform(k, shape, jnp.float32, -s, s)
    return {
        "embedding": jax.random.normal(ks[0], (vocab, embed_dim), jnp.float32),
        # stored pre-transposed: (E, 4H), (H, 4H); PyTorch gate order i,f,g,o
        "w_ih": u(ks[1], (embed_dim, 4 * hidden_dim)),
        "w_hh": u(ks[2], (hidden_dim, 4 * hidden_dim)),
        "b": u(ks[3], (1, 4 * hidden_dim)) + u(ks[4], (1, 4 * hidden_dim)),
        "w_out": u(ks[5], (hidden_dim, 2)),
        "b_out": u(ks[6], (1, 2)),
    }


if __name__ == "__main__":
    B, T, E, H, VOCAB = 4, 8, 16, 32, 50

    key = jax.random.PRNGKey(0)
    kp, kw = jax.random.split(key)
    params = init_params(kp, VOCAB, E, H)

    word_id = jax.random.randint(kw, (B, T), 0, VOCAB, dtype=jnp.int32)
    lengths = jnp.array([8, 5, 3, 1], dtype=jnp.int32)   # variable lengths (padded batch)

    forward = jax.jit(lstm_classifier_forward)
    logits = jax.block_until_ready(forward(word_id, lengths, params))

    expected = jax.block_until_ready(ref_forward(word_id, lengths, params))
    assert logits.shape == (B, 2)
    assert jnp.allclose(logits, expected, atol=5e-3, rtol=5e-3), (logits, expected)

    print("KERNEL_OK")
</pallas_src>

<mosaic_0001>
module attributes {stable_mosaic.version = 11 : i64} {
  func.func @lstm_recurrence_kernel(%arg0: i32, %arg1: i32, %arg2: memref<1xi32, #tpu.memory_space<smem>>, %arg3: memref<8x1xi32, #tpu.memory_space<vmem>>, %arg4: memref<1x64x16xbf16, #tpu.memory_space<vmem>>, %arg5: memref<16x512xbf16, #tpu.memory_space<vmem>>, %arg6: memref<1x512xf32, #tpu.memory_space<vmem>>, %arg7: memref<128x512xbf16, #tpu.memory_space<vmem>>, %arg8: memref<8x128xf32, #tpu.memory_space<vmem>>, %arg9: memref<8x128xf32, #tpu.memory_space<vmem>>, %arg10: memref<8x128xf32, #tpu.memory_space<vmem>>, %arg11: memref<64x512xf32, #tpu.memory_space<vmem>>) attributes {dimension_semantics = [#tpu.dimension_semantics<parallel>, #tpu.dimension_semantics<arbitrary>], iteration_bounds = array<i64: 1, 1>, scalar_prefetch = 1 : i64, scratch_operands = 3 : i64, tpu.core_type = #tpu.core_type<tc>, window_params = [{transform_indices = @transform_0, window_bounds = array<i64: 8, 1>}, {transform_indices = @transform_1, window_bounds = array<i64: 1, 64, 16>}, {pipeline_mode = #tpu.pipeline_mode<synchronous>, transform_indices = @transform_2, window_bounds = array<i64: 16, 512>}, {pipeline_mode = #tpu.pipeline_mode<synchronous>, transform_indices = @transform_3, window_bounds = array<i64: 1, 512>}, {pipeline_mode = #tpu.pipeline_mode<synchronous>, transform_indices = @transform_4, window_bounds = array<i64: 128, 512>}, {transform_indices = @transform_5, window_bounds = array<i64: 8, 128>}]} {
    %c8_i32 = arith.constant 8 : i32
    %0 = arith.muli %arg1, %c8_i32 : i32
    %c0_i32 = arith.constant 0 : i32
    %1 = arith.cmpi eq, %arg1, %c0_i32 : i32
    %2 = arith.extui %1 : i1 to i32
    %c0_i32_0 = arith.constant 0 : i32
    %3 = arith.cmpi ne, %2, %c0_i32_0 : i32
    scf.if %3 {
      %cst = arith.constant 0.000000e+00 : f32
      %11 = vector.broadcast %cst : f32 to vector<8x128xf32>
      %c0_4 = arith.constant 0 : index
      %c0_5 = arith.constant 0 : index
      %12 = vector.load %arg9[%c0_4, %c0_5] : memref<8x128xf32, #tpu.memory_space<vmem>>, vector<8x128xf32>
      tpu.vector_store %arg9[%c0_4, %c0_5], %11 {strides = array<i32>} : memref<8x128xf32, #tpu.memory_space<vmem>>, vector<8x128xf32>,
      %cst_6 = arith.constant 0.000000e+00 : f32
      %13 = vector.broadcast %cst_6 : f32 to vector<8x128xf32>
      %c0_7 = arith.constant 0 : index
      %c0_8 = arith.constant 0 : index
      %14 = vector.load %arg10[%c0_7, %c0_8] : memref<8x128xf32, #tpu.memory_space<vmem>>, vector<8x128xf32>
      tpu.vector_store %arg10[%c0_7, %c0_8], %13 {strides = array<i32>} : memref<8x128xf32, #tpu.memory_space<vmem>>, vector<8x128xf32>,
    } else {
    }
    %c0 = arith.constant 0 : index
    %4 = memref.load %arg2[%c0] : memref<1xi32, #tpu.memory_space<smem>>
    %5 = arith.cmpi slt, %0, %4 : i32
    %6 = arith.extui %5 : i1 to i32
    %c0_i32_1 = arith.constant 0 : i32
    %7 = arith.cmpi ne, %6, %c0_i32_1 : i32
    scf.if %7 {
      %c0_4 = arith.constant 0 : index
      %c0_5 = arith.constant 0 : index
      %c0_6 = arith.constant 0 : index
      %11 = vector.load %arg4[%c0_4, %c0_5, %c0_6] : memref<1x64x16xbf16, #tpu.memory_space<vmem>>, vector<1x64x16xbf16>
      %12 = vector.shape_cast %11 : vector<1x64x16xbf16> to vector<64x16xbf16>
      %c0_7 = arith.constant 0 : index
      %c0_8 = arith.constant 0 : index
      %13 = vector.load %arg5[%c0_7, %c0_8] : memref<16x512xbf16, #tpu.memory_space<vmem>>, vector<16x512xbf16>
      %cst = arith.constant dense<0.000000e+00> : vector<64x512xf32>
      %14 = tpu.matmul %12, %13, %cst {dimension_numbers = #tpu.dot_dimension_numbers<[1], [0], [0], [1], [0, 0, 1, 1], [], []>} : vector<64x16xbf16>, vector<16x512xbf16>, vector<64x512xf32> -> vector<64x512xf32>
      %c0_9 = arith.constant 0 : index
      %c0_10 = arith.constant 0 : index
      %15 = vector.load %arg6[%c0_9, %c0_10] : memref<1x512xf32, #tpu.memory_space<vmem>>, vector<1x512xf32>
      %16 = vector.broadcast %15 : vector<1x512xf32> to vector<64x512xf32>
      %17 = arith.addf %14, %16 : vector<64x512xf32>
      %c0_11 = arith.constant 0 : index
      %c0_12 = arith.constant 0 : index
      %18 = vector.load %arg11[%c0_11, %c0_12] : memref<64x512xf32, #tpu.memory_space<vmem>>, vector<64x512xf32>
      tpu.vector_store %arg11[%c0_11, %c0_12], %17 {strides = array<i32>} : memref<64x512xf32, #tpu.memory_space<vmem>>, vector<64x512xf32>,
      %c0_13 = arith.constant 0 : index
      %c0_14 = arith.constant 0 : index
      %19 = vector.load %arg3[%c0_13, %c0_14] : memref<8x1xi32, #tpu.memory_space<vmem>>, vector<8x1xi32>
      %c0_15 = arith.constant 0 : index
      %c0_16 = arith.constant 0 : index
      %20 = vector.load %arg7[%c0_15, %c0_16] : memref<128x512xbf16, #tpu.memory_space<vmem>>, vector<128x512xbf16>
      %c0_i32_17 = arith.constant 0 : i32
      %c0_18 = arith.constant 0 : index
      %c0_19 = arith.constant 0 : index
      %21 = vector.load %arg9[%c0_18, %c0_19] : memref<8x128xf32, #tpu.memory_space<vmem>>, vector<8x128xf32>
      %c0_20 = arith.constant 0 : index
      %c0_21 = arith.constant 0 : index
      %22 = vector.load %arg10[%c0_20, %c0_21] : memref<8x128xf32, #tpu.memory_space<vmem>>, vector<8x128xf32>
      %c8_i32_22 = arith.constant 8 : i32
      %23 = arith.muli %c0_i32_17, %c8_i32_22 : i32
      %24 = tpu.assume_multiple %23, 8 : i32
      %25 = arith.index_cast %24 : i32 to index
      %c0_23 = arith.constant 0 : index
      %26 = vector.load %arg11[%25, %c0_23] : memref<64x512xf32, #tpu.memory_space<vmem>>, vector<8x512xf32>
      %27 = arith.truncf %21 : vector<8x128xf32> to vector<8x128xbf16>
      %cst_24 = arith.constant dense<0.000000e+00> : vector<8x512xf32>
      %28 = tpu.matmul %27, %20, %cst_24 {dimension_numbers = #tpu.dot_dimension_numbers<[1], [0], [0], [1], [0, 0, 1, 1], [], []>} : vector<8x128xbf16>, vector<128x512xbf16>, vector<8x512xf32> -> vector<8x512xf32>
      %29 = arith.addf %26, %28 : vector<8x512xf32>
      %30 = vector.extract_strided_slice %29 {offsets = [0, 0], sizes = [8, 128], strides = [1, 1]} : vector<8x512xf32> to vector<8x128xf32>
      %cst_25 = arith.constant 5.000000e-01 : f32
      %31 = vector.broadcast %cst_25 : f32 to vector<8x128xf32>
      %32 = arith.mulf %31, %30 : vector<8x128xf32>
      %33 = math.tanh %32 : vector<8x128xf32>
      %cst_26 = arith.constant 5.000000e-01 : f32
      %34 = vector.broadcast %cst_26 : f32 to vector<8x128xf32>
      %35 = arith.mulf %34, %33 : vector<8x128xf32>
      %cst_27 = arith.constant 5.000000e-01 : f32
      %36 = vector.broadcast %cst_27 : f32 to vector<8x128xf32>
      %37 = arith.addf %35, %36 : vector<8x128xf32>
      %38 = vector.extract_strided_slice %29 {offsets = [0, 128], sizes = [8, 128], strides = [1, 1]} : vector<8x512xf32> to vector<8x128xf32>
      %cst_28 = arith.constant 5.000000e-01 : f32
      %39 = vector.broadcast %cst_28 : f32 to vector<8x128xf32>
      %40 = arith.mulf %39, %38 : vector<8x128xf32>
      %41 = math.tanh %40 : vector<8x128xf32>
      %cst_29 = arith.constant 5.000000e-01 : f32
      %42 = vector.broadcast %cst_29 : f32 to vector<8x128xf32>
      %43 = arith.mulf %42, %41 : vector<8x128xf32>
      %cst_30 = arith.constant 5.000000e-01 : f32
      %44 = vector.broadcast %cst_30 : f32 to vector<8x128xf32>
      %45 = arith.addf %43, %44 : vector<8x128xf32>
      %46 = vector.extract_strided_slice %29 {offsets = [0, 256], sizes = [8, 128], strides = [1, 1]} : vector<8x512xf32> to vector<8x128xf32>
      %47 = math.tanh %46 : vector<8x128xf32>
      %48 = vector.extract_strided_slice %29 {offsets = [0, 384], sizes = [8, 128], strides = [1, 1]} : vector<8x512xf32> to vector<8x128xf32>
      %cst_31 = arith.constant 5.000000e-01 : f32
      %49 = vector.broadcast %cst_31 : f32 to vector<8x128xf32>
      %50 = arith.mulf %49, %48 : vector<8x128xf32>
      %51 = math.tanh %50 : vector<8x128xf32>
      %cst_32 = arith.constant 5.000000e-01 : f32
      %52 = vector.broadcast %cst_32 : f32 to vector<8x128xf32>
      %53 = arith.mulf %52, %51 : vector<8x128xf32>
      %cst_33 = arith.constant 5.000000e-01 : f32
      %54 = vector.broadcast %cst_33 : f32 to vector<8x128xf32>
      %55 = arith.addf %53, %54 : vector<8x128xf32>
      %56 = arith.mulf %45, %22 : vector<8x128xf32>
      %57 = arith.mulf %37, %47 : vector<8x128xf32>
      %58 = arith.addf %56, %57 : vector<8x128xf32>
      %59 = math.tanh %58 : vector<8x128xf32>
      %60 = arith.mulf %55, %59 : vector<8x128xf32>
      %61 = arith.addi %0, %c0_i32_17 : i32
      %62 = vector.broadcast %61 : i32 to vector<8x1xi32>
      %63 = arith.cmpi sgt, %19, %62 : vector<8x1xi32>
      %64 = vector.shape_cast %63 : vector<8x1xi1> to vector<8x1xi1>
      %65 = vector.broadcast %64 : vector<8x1xi1> to vector<8x128xi1>
      %66 = arith.select %65, %60, %21 : vector<8x128xi1>, vector<8x128xf32>
      %c0_34 = arith.constant 0 : index
      %c0_35 = arith.constant 0 : index
      %67 = vector.load %arg9[%c0_34, %c0_35] : memref<8x128xf32, #tpu.memory_space<vmem>>, vector<8x128xf32>
      tpu.vector_store %arg9[%c0_34, %c0_35], %66 {strides = array<i32>} : memref<8x128xf32, #tpu.memory_space<vmem>>, vector<8x128xf32>,
      %68 = vector.shape_cast %63 : vector<8x1xi1> to vector<8x1xi1>
      %69 = vector.broadcast %68 : vector<8x1xi1> to vector<8x128xi1>
      %70 = arith.select %69, %58, %22 : vector<8x128xi1>, vector<8x128xf32>
      %c0_36 = arith.constant 0 : index
      %c0_37 = arith.constant 0 : index
      %71 = vector.load %arg10[%c0_36, %c0_37] : memref<8x128xf32, #tpu.memory_space<vmem>>, vector<8x128xf32>
      tpu.vector_store %arg10[%c0_36, %c0_37], %70 {strides = array<i32>} : memref<8x128xf32, #tpu.memory_space<vmem>>, vector<8x128xf32>,
      %c1_i32 = arith.constant 1 : i32
      %c0_38 = arith.constant 0 : index
      %c0_39 = arith.constant 0 : index
      %72 = vector.load %arg9[%c0_38, %c0_39] : memref<8x128xf32, #tpu.memory_space<vmem>>, vector<8x128xf32>
      %c0_40 = arith.constant 0 : index
      %c0_41 = arith.constant 0 : index
      %73 = vector.load %arg10[%c0_40, %c0_41] : memref<8x128xf32, #tpu.memory_space<vmem>>, vector<8x128xf32>
      %c8_i32_42 = arith.constant 8 : i32
      %74 = arith.muli %c1_i32, %c8_i32_42 : i32
      %75 = tpu.assume_multiple %74, 8 : i32
      %76 = arith.index_cast %75 : i32 to index
      %c0_43 = arith.constant 0 : index
      %77 = vector.load %arg11[%76, %c0_43] : memref<64x512xf32, #tpu.memory_space<vmem>>, vector<8x512xf32>
      %78 = arith.truncf %72 : vector<8x128xf32> to vector<8x128xbf16>
      %cst_44 = arith.constant dense<0.000000e+00> : vector<8x512xf32>
      %79 = tpu.matmul %78, %20, %cst_44 {dimension_numbers = #tpu.dot_dimension_numbers<[1], [0], [0], [1], [0, 0, 1, 1], [], []>} : vector<8x128xbf16>, vector<128x512xbf16>, vector<8x512xf32> -> vector<8x512xf32>
      %80 = arith.addf %77, %79 : vector<8x512xf32>
      %81 = vector.extract_strided_slice %80 {offsets = [0, 0], sizes = [8, 128], strides = [1, 1]} : vector<8x512xf32> to vector<8x128xf32>
      %cst_45 = arith.constant 5.000000e-01 : f32
      %82 = vector.broadcast %cst_45 : f32 to vector<8x128xf32>
      %83 = arith.mulf %82, %81 : vector<8x128xf32>
      %84 = math.tanh %83 : vector<8x128xf32>
      %cst_46 = arith.constant 5.000000e-01 : f32
      %85 = vector.broadcast %cst_46 : f32 to vector<8x128xf32>
      %86 = arith.mulf %85, %84 : vector<8x128xf32>
      %cst_47 = arith.constant 5.000000e-01 : f32
      %87 = vector.broadcast %cst_47 : f32 to vector<8x128xf32>
      %88 = arith.addf %86, %87 : vector<8x128xf32>
      %89 = vector.extract_strided_slice %80 {offsets = [0, 128], sizes = [8, 128], strides = [1, 1]} : vector<8x512xf32> to vector<8x128xf32>
      %cst_48 = arith.constant 5.000000e-01 : f32
      %90 = vector.broadcast %cst_48 : f32 to vector<8x128xf32>
      %91 = arith.mulf %90, %89 : vector<8x128xf32>
      %92 = math.tanh %91 : vector<8x128xf32>
      %cst_49 = arith.constant 5.000000e-01 : f32
      %93 = vector.broadcast %cst_49 : f32 to vector<8x128xf32>
      %94 = arith.mulf %93, %92 : vector<8x128xf32>
      %cst_50 = arith.constant 5.000000e-01 : f32
      %95 = vector.broadcast %cst_50 : f32 to vector<8x128xf32>
      %96 = arith.addf %94, %95 : vector<8x128xf32>
      %97 = vector.extract_strided_slice %80 {offsets = [0, 256], sizes = [8, 128], strides = [1, 1]} : vector<8x512xf32> to vector<8x128xf32>
      %98 = math.tanh %97 : vector<8x128xf32>
      %99 = vector.extract_strided_slice %80 {offsets = [0, 384], sizes = [8, 128], strides = [1, 1]} : vector<8x512xf32> to vector<8x128xf32>
      %cst_51 = arith.constant 5.000000e-01 : f32
      %100 = vector.broadcast %cst_51 : f32 to vector<8x128xf32>
      %101 = arith.mulf %100, %99 : vector<8x128xf32>
      %102 = math.tanh %101 : vector<8x128xf32>
      %cst_52 = arith.constant 5.000000e-01 : f32
      %103 = vector.broadcast %cst_52 : f32 to vector<8x128xf32>
      %104 = arith.mulf %103, %102 : vector<8x128xf32>
      %cst_53 = arith.constant 5.000000e-01 : f32
      %105 = vector.broadcast %cst_53 : f32 to vector<8x128xf32>
      %106 = arith.addf %104, %105 : vector<8x128xf32>
      %107 = arith.mulf %96, %73 : vector<8x128xf32>
      %108 = arith.mulf %88, %98 : vector<8x128xf32>
      %109 = arith.addf %107, %108 : vector<8x128xf32>
      %110 = math.tanh %109 : vector<8x128xf32>
      %111 = arith.mulf %106, %110 : vector<8x128xf32>
      %112 = arith.addi %0, %c1_i32 : i32
      %113 = vector.broadcast %112 : i32 to vector<8x1xi32>
      %114 = arith.cmpi sgt, %19, %113 : vector<8x1xi32>
      %115 = vector.shape_cast %114 : vector<8x1xi1> to vector<8x1xi1>
      %116 = vector.broadcast %115 : vector<8x1xi1> to vector<8x128xi1>
      %117 = arith.select %116, %111, %72 : vector<8x128xi1>, vector<8x128xf32>
      %c0_54 = arith.constant 0 : index
      %c0_55 = arith.constant 0 : index
      %118 = vector.load %arg9[%c0_54, %c0_55] : memref<8x128xf32, #tpu.memory_space<vmem>>, vector<8x128xf32>
      tpu.vector_store %arg9[%c0_54, %c0_55], %117 {strides = array<i32>} : memref<8x128xf32, #tpu.memory_space<vmem>>, vector<8x128xf32>,
      %119 = vector.shape_cast %114 : vector<8x1xi1> to vector<8x1xi1>
      %120 = vector.broadcast %119 : vector<8x1xi1> to vector<8x128xi1>
      %121 = arith.select %120, %109, %73 : vector<8x128xi1>, vector<8x128xf32>
      %c0_56 = arith.constant 0 : index
      %c0_57 = arith.constant 0 : index
      %122 = vector.load %arg10[%c0_56, %c0_57] : memref<8x128xf32, #tpu.memory_space<vmem>>, vector<8x128xf32>
      tpu.vector_store %arg10[%c0_56, %c0_57], %121 {strides = array<i32>} : memref<8x128xf32, #tpu.memory_space<vmem>>, vector<8x128xf32>,
      %c2_i32 = arith.constant 2 : i32
      %c0_58 = arith.constant 0 : index
      %c0_59 = arith.constant 0 : index
      %123 = vector.load %arg9[%c0_58, %c0_59] : memref<8x128xf32, #tpu.memory_space<vmem>>, vector<8x128xf32>
      %c0_60 = arith.constant 0 : index
      %c0_61 = arith.constant 0 : index
      %124 = vector.load %arg10[%c0_60, %c0_61] : memref<8x128xf32, #tpu.memory_space<vmem>>, vector<8x128xf32>
      %c8_i32_62 = arith.constant 8 : i32
      %125 = arith.muli %c2_i32, %c8_i32_62 : i32
      %126 = tpu.assume_multiple %125, 8 : i32
      %127 = arith.index_cast %126 : i32 to index
      %c0_63 = arith.constant 0 : index
      %128 = vector.load %arg11[%127, %c0_63] : memref<64x512xf32, #tpu.memory_space<vmem>>, vector<8x512xf32>
      %129 = arith.truncf %123 : vector<8x128xf32> to vector<8x128xbf16>
      %cst_64 = arith.constant dense<0.000000e+00> : vector<8x512xf32>
      %130 = tpu.matmul %129, %20, %cst_64 {dimension_numbers = #tpu.dot_dimension_numbers<[1], [0], [0], [1], [0, 0, 1, 1], [], []>} : vector<8x128xbf16>, vector<128x512xbf16>, vector<8x512xf32> -> vector<8x512xf32>
      %131 = arith.addf %128, %130 : vector<8x512xf32>
      %132 = vector.extract_strided_slice %131 {offsets = [0, 0], sizes = [8, 128], strides = [1, 1]} : vector<8x512xf32> to vector<8x128xf32>
      %cst_65 = arith.constant 5.000000e-01 : f32
      %133 = vector.broadcast %cst_65 : f32 to vector<8x128xf32>
      %134 = arith.mulf %133, %132 : vector<8x128xf32>
      %135 = math.tanh %134 : vector<8x128xf32>
      %cst_66 = arith.constant 5.000000e-01 : f32
      %136 = vector.broadcast %cst_66 : f32 to vector<8x128xf32>
      %137 = arith.mulf %136, %135 : vector<8x128xf32>
      %cst_67 = arith.constant 5.000000e-01 : f32
      %138 = vector.broadcast %cst_67 : f32 to vector<8x128xf32>
      %139 = arith.addf %137, %138 : vector<8x128xf32>
      %140 = vector.extract_strided_slice %131 {offsets = [0, 128], sizes = [8, 128], strides = [1, 1]} : vector<8x512xf32> to vector<8x128xf32>
      %cst_68 = arith.constant 5.000000e-01 : f32
      %141 = vector.broadcast %cst_68 : f32 to vector<8x128xf32>
      %142 = arith.mulf %141, %140 : vector<8x128xf32>
      %143 = math.tanh %142 : vector<8x128xf32>
      %cst_69 = arith.constant 5.000000e-01 : f32
      %144 = vector.broadcast %cst_69 : f32 to vector<8x128xf32>
      %145 = arith.mulf %144, %143 : vector<8x128xf32>
      %cst_70 = arith.constant 5.000000e-01 : f32
      %146 = vector.broadcast %cst_70 : f32 to vector<8x128xf32>
      %147 = arith.addf %145, %146 : vector<8x128xf32>
      %148 = vector.extract_strided_slice %131 {offsets = [0, 256], sizes = [8, 128], strides = [1, 1]} : vector<8x512xf32> to vector<8x128xf32>
      %149 = math.tanh %148 : vector<8x128xf32>
      %150 = vector.extract_strided_slice %131 {offsets = [0, 384], sizes = [8, 128], strides = [1, 1]} : vector<8x512xf32> to vector<8x128xf32>
      %cst_71 = arith.constant 5.000000e-01 : f32
      %151 = vector.broadcast %cst_71 : f32 to vector<8x128xf32>
      %152 = arith.mulf %151, %150 : vector<8x128xf32>
      %153 = math.tanh %152 : vector<8x128xf32>
      %cst_72 = arith.constant 5.000000e-01 : f32
      %154 = vector.broadcast %cst_72 : f32 to vector<8x128xf32>
      %155 = arith.mulf %154, %153 : vector<8x128xf32>
      %cst_73 = arith.constant 5.000000e-01 : f32
      %156 = vector.broadcast %cst_73 : f32 to vector<8x128xf32>
      %157 = arith.addf %155, %156 : vector<8x128xf32>
      %158 = arith.mulf %147, %124 : vector<8x128xf32>
      %159 = arith.mulf %139, %149 : vector<8x128xf32>
      %160 = arith.addf %158, %159 : vector<8x128xf32>
      %161 = math.tanh %160 : vector<8x128xf32>
      %162 = arith.mulf %157, %161 : vector<8x128xf32>
      %163 = arith.addi %0, %c2_i32 : i32
      %164 = vector.broadcast %163 : i32 to vector<8x1xi32>
      %165 = arith.cmpi sgt, %19, %164 : vector<8x1xi32>
      %166 = vector.shape_cast %165 : vector<8x1xi1> to vector<8x1xi1>
      %167 = vector.broadcast %166 : vector<8x1xi1> to vector<8x128xi1>
      %168 = arith.select %167, %162, %123 : vector<8x128xi1>, vector<8x128xf32>
      %c0_74 = arith.constant 0 : index
      %c0_75 = arith.constant 0 : index
      %169 = vector.load %arg9[%c0_74, %c0_75] : memref<8x128xf32, #tpu.memory_space<vmem>>, vector<8x128xf32>
      tpu.vector_store %arg9[%c0_74, %c0_75], %168 {strides = array<i32>} : memref<8x128xf32, #tpu.memory_space<vmem>>, vector<8x128xf32>,
      %170 = vector.shape_cast %165 : vector<8x1xi1> to vector<8x1xi1>
      %171 = vector.broadcast %170 : vector<8x1xi1> to vector<8x128xi1>
      %172 = arith.select %171, %160, %124 : vector<8x128xi1>, vector<8x128xf32>
      %c0_76 = arith.constant 0 : index
      %c0_77 = arith.constant 0 : index
      %173 = vector.load %arg10[%c0_76, %c0_77] : memref<8x128xf32, #tpu.memory_space<vmem>>, vector<8x128xf32>
      tpu.vector_store %arg10[%c0_76, %c0_77], %172 {strides = array<i32>} : memref<8x128xf32, #tpu.memory_space<vmem>>, vector<8x128xf32>,
      %c3_i32 = arith.constant 3 : i32
      %c0_78 = arith.constant 0 : index
      %c0_79 = arith.constant 0 : index
      %174 = vector.load %arg9[%c0_78, %c0_79] : memref<8x128xf32, #tpu.memory_space<vmem>>, vector<8x128xf32>
      %c0_80 = arith.constant 0 : index
      %c0_81 = arith.constant 0 : index
      %175 = vector.load %arg10[%c0_80, %c0_81] : memref<8x128xf32, #tpu.memory_space<vmem>>, vector<8x128xf32>
      %c8_i32_82 = arith.constant 8 : i32
      %176 = arith.muli %c3_i32, %c8_i32_82 : i32
      %177 = tpu.assume_multiple %176, 8 : i32
      %178 = arith.index_cast %177 : i32 to index
      %c0_83 = arith.constant 0 : index
      %179 = vector.load %arg11[%178, %c0_83] : memref<64x512xf32, #tpu.memory_space<vmem>>, vector<8x512xf32>
      %180 = arith.truncf %174 : vector<8x128xf32> to vector<8x128xbf16>
      %cst_84 = arith.constant dense<0.000000e+00> : vector<8x512xf32>
      %181 = tpu.matmul %180, %20, %cst_84 {dimension_numbers = #tpu.dot_dimension_numbers<[1], [0], [0], [1], [0, 0, 1, 1], [], []>} : vector<8x128xbf16>, vector<128x512xbf16>, vector<8x512xf32> -> vector<8x512xf32>
      %182 = arith.addf %179, %181 : vector<8x512xf32>
      %183 = vector.extract_strided_slice %182 {offsets = [0, 0], sizes = [8, 128], strides = [1, 1]} : vector<8x512xf32> to vector<8x128xf32>
      %cst_85 = arith.constant 5.000000e-01 : f32
      %184 = vector.broadcast %cst_85 : f32 to vector<8x128xf32>
      %185 = arith.mulf %184, %183 : vector<8x128xf32>
      %186 = math.tanh %185 : vector<8x128xf32>
      %cst_86 = arith.constant 5.000000e-01 : f32
      %187 = vector.broadcast %cst_86 : f32 to vector<8x128xf32>
      %188 = arith.mulf %187, %186 : vector<8x128xf32>
      %cst_87 = arith.constant 5.000000e-01 : f32
      %189 = vector.broadcast %cst_87 : f32 to vector<8x128xf32>
      %190 = arith.addf %188, %189 : vector<8x128xf32>
      %191 = vector.extract_strided_slice %182 {offsets = [0, 128], sizes = [8, 128], strides = [1, 1]} : vector<8x512xf32> to vector<8x128xf32>
      %cst_88 = arith.constant 5.000000e-01 : f32
      %192 = vector.broadcast %cst_88 : f32 to vector<8x128xf32>
      %193 = arith.mulf %192, %191 : vector<8x128xf32>
      %194 = math.tanh %193 : vector<8x128xf32>
      %cst_89 = arith.constant 5.000000e-01 : f32
      %195 = vector.broadcast %cst_89 : f32 to vector<8x128xf32>
      %196 = arith.mulf %195, %194 : vector<8x128xf32>
      %cst_90 = arith.constant 5.000000e-01 : f32
      %197 = vector.broadcast %cst_90 : f32 to vector<8x128xf32>
      %198 = arith.addf %196, %197 : vector<8x128xf32>
      %199 = vector.extract_strided_slice %182 {offsets = [0, 256], sizes = [8, 128], strides = [1, 1]} : vector<8x512xf32> to vector<8x128xf32>
      %200 = math.tanh %199 : vector<8x128xf32>
      %201 = vector.extract_strided_slice %182 {offsets = [0, 384], sizes = [8, 128], strides = [1, 1]} : vector<8x512xf32> to vector<8x128xf32>
      %cst_91 = arith.constant 5.000000e-01 : f32
      %202 = vector.broadcast %cst_91 : f32 to vector<8x128xf32>
      %203 = arith.mulf %202, %201 : vector<8x128xf32>
      %204 = math.tanh %203 : vector<8x128xf32>
      %cst_92 = arith.constant 5.000000e-01 : f32
      %205 = vector.broadcast %cst_92 : f32 to vector<8x128xf32>
      %206 = arith.mulf %205, %204 : vector<8x128xf32>
      %cst_93 = arith.constant 5.000000e-01 : f32
      %207 = vector.broadcast %cst_93 : f32 to vector<8x128xf32>
      %208 = arith.addf %206, %207 : vector<8x128xf32>
      %209 = arith.mulf %198, %175 : vector<8x128xf32>
      %210 = arith.mulf %190, %200 : vector<8x128xf32>
      %211 = arith.addf %209, %210 : vector<8x128xf32>
      %212 = math.tanh %211 : vector<8x128xf32>
      %213 = arith.mulf %208, %212 : vector<8x128xf32>
      %214 = arith.addi %0, %c3_i32 : i32
      %215 = vector.broadcast %214 : i32 to vector<8x1xi32>
      %216 = arith.cmpi sgt, %19, %215 : vector<8x1xi32>
      %217 = vector.shape_cast %216 : vector<8x1xi1> to vector<8x1xi1>
      %218 = vector.broadcast %217 : vector<8x1xi1> to vector<8x128xi1>
      %219 = arith.select %218, %213, %174 : vector<8x128xi1>, vector<8x128xf32>
      %c0_94 = arith.constant 0 : index
      %c0_95 = arith.constant 0 : index
      %220 = vector.load %arg9[%c0_94, %c0_95] : memref<8x128xf32, #tpu.memory_space<vmem>>, vector<8x128xf32>
      tpu.vector_store %arg9[%c0_94, %c0_95], %219 {strides = array<i32>} : memref<8x128xf32, #tpu.memory_space<vmem>>, vector<8x128xf32>,
      %221 = vector.shape_cast %216 : vector<8x1xi1> to vector<8x1xi1>
      %222 = vector.broadcast %221 : vector<8x1xi1> to vector<8x128xi1>
      %223 = arith.select %222, %211, %175 : vector<8x128xi1>, vector<8x128xf32>
      %c0_96 = arith.constant 0 : index
      %c0_97 = arith.constant 0 : index
      %224 = vector.load %arg10[%c0_96, %c0_97] : memref<8x128xf32, #tpu.memory_space<vmem>>, vector<8x128xf32>
      tpu.vector_store %arg10[%c0_96, %c0_97], %223 {strides = array<i32>} : memref<8x128xf32, #tpu.memory_space<vmem>>, vector<8x128xf32>,
      %c4_i32 = arith.constant 4 : i32
      %c0_98 = arith.constant 0 : index
      %c0_99 = arith.constant 0 : index
      %225 = vector.load %arg9[%c0_98, %c0_99] : memref<8x128xf32, #tpu.memory_space<vmem>>, vector<8x128xf32>
      %c0_100 = arith.constant 0 : index
      %c0_101 = arith.constant 0 : index
      %226 = vector.load %arg10[%c0_100, %c0_101] : memref<8x128xf32, #tpu.memory_space<vmem>>, vector<8x128xf32>
      %c8_i32_102 = arith.constant 8 : i32
      %227 = arith.muli %c4_i32, %c8_i32_102 : i32
      %228 = tpu.assume_multiple %227, 8 : i32
      %229 = arith.index_cast %228 : i32 to index
      %c0_103 = arith.constant 0 : index
      %230 = vector.load %arg11[%229, %c0_103] : memref<64x512xf32, #tpu.memory_space<vmem>>, vector<8x512xf32>
      %231 = arith.truncf %225 : vector<8x128xf32> to vector<8x128xbf16>
      %cst_104 = arith.constant dense<0.000000e+00> : vector<8x512xf32>
      %232 = tpu.matmul %231, %20, %cst_104 {dimension_numbers = #tpu.dot_dimension_numbers<[1], [0], [0], [1], [0, 0, 1, 1], [], []>} : vector<8x128xbf16>, vector<128x512xbf16>, vector<8x512xf32> -> vector<8x512xf32>
      %233 = arith.addf %230, %232 : vector<8x512xf32>
      %234 = vector.extract_strided_slice %233 {offsets = [0, 0], sizes = [8, 128], strides = [1, 1]} : vector<8x512xf32> to vector<8x128xf32>
      %cst_105 = arith.constant 5.000000e-01 : f32
      %235 = vector.broadcast %cst_105 : f32 to vector<8x128xf32>
      %236 = arith.mulf %235, %234 : vector<8x128xf32>
      %237 = math.tanh %236 : vector<8x128xf32>
      %cst_106 = arith.constant 5.000000e-01 : f32
      %238 = vector.broadcast %cst_106 : f32 to vector<8x128xf32>
      %239 = arith.mulf %238, %237 : vector<8x128xf32>
      %cst_107 = arith.constant 5.000000e-01 : f32
      %240 = vector.broadcast %cst_107 : f32 to vector<8x128xf32>
      %241 = arith.addf %239, %240 : vector<8x128xf32>
      %242 = vector.extract_strided_slice %233 {offsets = [0, 128], sizes = [8, 128], strides = [1, 1]} : vector<8x512xf32> to vector<8x128xf32>
      %cst_108 = arith.constant 5.000000e-01 : f32
      %243 = vector.broadcast %cst_108 : f32 to vector<8x128xf32>
      %244 = arith.mulf %243, %242 : vector<8x128xf32>
      %245 = math.tanh %244 : vector<8x128xf32>
      %cst_109 = arith.constant 5.000000e-01 : f32
      %246 = vector.broadcast %cst_109 : f32 to vector<8x128xf32>
      %247 = arith.mulf %246, %245 : vector<8x128xf32>
      %cst_110 = arith.constant 5.000000e-01 : f32
      %248 = vector.broadcast %cst_110 : f32 to vector<8x128xf32>
      %249 = arith.addf %247, %248 : vector<8x128xf32>
      %250 = vector.extract_strided_slice %233 {offsets = [0, 256], sizes = [8, 128], strides = [1, 1]} : vector<8x512xf32> to vector<8x128xf32>
      %251 = math.tanh %250 : vector<8x128xf32>
      %252 = vector.extract_strided_slice %233 {offsets = [0, 384], sizes = [8, 128], strides = [1, 1]} : vector<8x512xf32> to vector<8x128xf32>
      %cst_111 = arith.constant 5.000000e-01 : f32
      %253 = vector.broadcast %cst_111 : f32 to vector<8x128xf32>
      %254 = arith.mulf %253, %252 : vector<8x128xf32>
      %255 = math.tanh %254 : vector<8x128xf32>
      %cst_112 = arith.constant 5.000000e-01 : f32
      %256 = vector.broadcast %cst_112 : f32 to vector<8x128xf32>
      %257 = arith.mulf %256, %255 : vector<8x128xf32>
      %cst_113 = arith.constant 5.000000e-01 : f32
      %258 = vector.broadcast %cst_113 : f32 to vector<8x128xf32>
      %259 = arith.addf %257, %258 : vector<8x128xf32>
      %260 = arith.mulf %249, %226 : vector<8x128xf32>
      %261 = arith.mulf %241, %251 : vector<8x128xf32>
      %262 = arith.addf %260, %261 : vector<8x128xf32>
      %263 = math.tanh %262 : vector<8x128xf32>
      %264 = arith.mulf %259, %263 : vector<8x128xf32>
      %265 = arith.addi %0, %c4_i32 : i32
      %266 = vector.broadcast %265 : i32 to vector<8x1xi32>
      %267 = arith.cmpi sgt, %19, %266 : vector<8x1xi32>
      %268 = vector.shape_cast %267 : vector<8x1xi1> to vector<8x1xi1>
      %269 = vector.broadcast %268 : vector<8x1xi1> to vector<8x128xi1>
      %270 = arith.select %269, %264, %225 : vector<8x128xi1>, vector<8x128xf32>
      %c0_114 = arith.constant 0 : index
      %c0_115 = arith.constant 0 : index
      %271 = vector.load %arg9[%c0_114, %c0_115] : memref<8x128xf32, #tpu.memory_space<vmem>>, vector<8x128xf32>
      tpu.vector_store %arg9[%c0_114, %c0_115], %270 {strides = array<i32>} : memref<8x128xf32, #tpu.memory_space<vmem>>, vector<8x128xf32>,
      %272 = vector.shape_cast %267 : vector<8x1xi1> to vector<8x1xi1>
      %273 = vector.broadcast %272 : vector<8x1xi1> to vector<8x128xi1>
      %274 = arith.select %273, %262, %226 : vector<8x128xi1>, vector<8x128xf32>
      %c0_116 = arith.constant 0 : index
      %c0_117 = arith.constant 0 : index
      %275 = vector.load %arg10[%c0_116, %c0_117] : memref<8x128xf32, #tpu.memory_space<vmem>>, vector<8x128xf32>
      tpu.vector_store %arg10[%c0_116, %c0_117], %274 {strides = array<i32>} : memref<8x128xf32, #tpu.memory_space<vmem>>, vector<8x128xf32>,
      %c5_i32 = arith.constant 5 : i32
      %c0_118 = arith.constant 0 : index
      %c0_119 = arith.constant 0 : index
      %276 = vector.load %arg9[%c0_118, %c0_119] : memref<8x128xf32, #tpu.memory_space<vmem>>, vector<8x128xf32>
      %c0_120 = arith.constant 0 : index
      %c0_121 = arith.constant 0 : index
      %277 = vector.load %arg10[%c0_120, %c0_121] : memref<8x128xf32, #tpu.memory_space<vmem>>, vector<8x128xf32>
      %c8_i32_122 = arith.constant 8 : i32
      %278 = arith.muli %c5_i32, %c8_i32_122 : i32
      %279 = tpu.assume_multiple %278, 8 : i32
      %280 = arith.index_cast %279 : i32 to index
      %c0_123 = arith.constant 0 : index
      %281 = vector.load %arg11[%280, %c0_123] : memref<64x512xf32, #tpu.memory_space<vmem>>, vector<8x512xf32>
      %282 = arith.truncf %276 : vector<8x128xf32> to vector<8x128xbf16>
      %cst_124 = arith.constant dense<0.000000e+00> : vector<8x512xf32>
      %283 = tpu.matmul %282, %20, %cst_124 {dimension_numbers = #tpu.dot_dimension_numbers<[1], [0], [0], [1], [0, 0, 1, 1], [], []>} : vector<8x128xbf16>, vector<128x512xbf16>, vector<8x512xf32> -> vector<8x512xf32>
      %284 = arith.addf %281, %283 : vector<8x512xf32>
      %285 = vector.extract_strided_slice %284 {offsets = [0, 0], sizes = [8, 128], strides = [1, 1]} : vector<8x512xf32> to vector<8x128xf32>
      %cst_125 = arith.constant 5.000000e-01 : f32
      %286 = vector.broadcast %cst_125 : f32 to vector<8x128xf32>
      %287 = arith.mulf %286, %285 : vector<8x128xf32>
      %288 = math.tanh %287 : vector<8x128xf32>
      %cst_126 = arith.constant 5.000000e-01 : f32
      %289 = vector.broadcast %cst_126 : f32 to vector<8x128xf32>
      %290 = arith.mulf %289, %288 : vector<8x128xf32>
      %cst_127 = arith.constant 5.000000e-01 : f32
      %291 = vector.broadcast %cst_127 : f32 to vector<8x128xf32>
      %292 = arith.addf %290, %291 : vector<8x128xf32>
      %293 = vector.extract_strided_slice %284 {offsets = [0, 128], sizes = [8, 128], strides = [1, 1]} : vector<8x512xf32> to vector<8x128xf32>
      %cst_128 = arith.constant 5.000000e-01 : f32
      %294 = vector.broadcast %cst_128 : f32 to vector<8x128xf32>
      %295 = arith.mulf %294, %293 : vector<8x128xf32>
      %296 = math.tanh %295 : vector<8x128xf32>
      %cst_129 = arith.constant 5.000000e-01 : f32
      %297 = vector.broadcast %cst_129 : f32 to vector<8x128xf32>
      %298 = arith.mulf %297, %296 : vector<8x128xf32>
      %cst_130 = arith.constant 5.000000e-01 : f32
      %299 = vector.broadcast %cst_130 : f32 to vector<8x128xf32>
      %300 = arith.addf %298, %299 : vector<8x128xf32>
      %301 = vector.extract_strided_slice %284 {offsets = [0, 256], sizes = [8, 128], strides = [1, 1]} : vector<8x512xf32> to vector<8x128xf32>
      %302 = math.tanh %301 : vector<8x128xf32>
      %303 = vector.extract_strided_slice %284 {offsets = [0, 384], sizes = [8, 128], strides = [1, 1]} : vector<8x512xf32> to vector<8x128xf32>
      %cst_131 = arith.constant 5.000000e-01 : f32
      %304 = vector.broadcast %cst_131 : f32 to vector<8x128xf32>
      %305 = arith.mulf %304, %303 : vector<8x128xf32>
      %306 = math.tanh %305 : vector<8x128xf32>
      %cst_132 = arith.constant 5.000000e-01 : f32
      %307 = vector.broadcast %cst_132 : f32 to vector<8x128xf32>
      %308 = arith.mulf %307, %306 : vector<8x128xf32>
      %cst_133 = arith.constant 5.000000e-01 : f32
      %309 = vector.broadcast %cst_133 : f32 to vector<8x128xf32>
      %310 = arith.addf %308, %309 : vector<8x128xf32>
      %311 = arith.mulf %300, %277 : vector<8x128xf32>
      %312 = arith.mulf %292, %302 : vector<8x128xf32>
      %313 = arith.addf %311, %312 : vector<8x128xf32>
      %314 = math.tanh %313 : vector<8x128xf32>
      %315 = arith.mulf %310, %314 : vector<8x128xf32>
      %316 = arith.addi %0, %c5_i32 : i32
      %317 = vector.broadcast %316 : i32 to vector<8x1xi32>
      %318 = arith.cmpi sgt, %19, %317 : vector<8x1xi32>
      %319 = vector.shape_cast %318 : vector<8x1xi1> to vector<8x1xi1>
      %320 = vector.broadcast %319 : vector<8x1xi1> to vector<8x128xi1>
      %321 = arith.select %320, %315, %276 : vector<8x128xi1>, vector<8x128xf32>
      %c0_134 = arith.constant 0 : index
      %c0_135 = arith.constant 0 : index
      %322 = vector.load %arg9[%c0_134, %c0_135] : memref<8x128xf32, #tpu.memory_space<vmem>>, vector<8x128xf32>
      tpu.vector_store %arg9[%c0_134, %c0_135], %321 {strides = array<i32>} : memref<8x128xf32, #tpu.memory_space<vmem>>, vector<8x128xf32>,
      %323 = vector.shape_cast %318 : vector<8x1xi1> to vector<8x1xi1>
      %324 = vector.broadcast %323 : vector<8x1xi1> to vector<8x128xi1>
      %325 = arith.select %324, %313, %277 : vector<8x128xi1>, vector<8x128xf32>
      %c0_136 = arith.constant 0 : index
      %c0_137 = arith.constant 0 : index
      %326 = vector.load %arg10[%c0_136, %c0_137] : memref<8x128xf32, #tpu.memory_space<vmem>>, vector<8x128xf32>
      tpu.vector_store %arg10[%c0_136, %c0_137], %325 {strides = array<i32>} : memref<8x128xf32, #tpu.memory_space<vmem>>, vector<8x128xf32>,
      %c6_i32 = arith.constant 6 : i32
      %c0_138 = arith.constant 0 : index
      %c0_139 = arith.constant 0 : index
      %327 = vector.load %arg9[%c0_138, %c0_139] : memref<8x128xf32, #tpu.memory_space<vmem>>, vector<8x128xf32>
      %c0_140 = arith.constant 0 : index
      %c0_141 = arith.constant 0 : index
      %328 = vector.load %arg10[%c0_140, %c0_141] : memref<8x128xf32, #tpu.memory_space<vmem>>, vector<8x128xf32>
      %c8_i32_142 = arith.constant 8 : i32
      %329 = arith.muli %c6_i32, %c8_i32_142 : i32
      %330 = tpu.assume_multiple %329, 8 : i32
      %331 = arith.index_cast %330 : i32 to index
      %c0_143 = arith.constant 0 : index
      %332 = vector.load %arg11[%331, %c0_143] : memref<64x512xf32, #tpu.memory_space<vmem>>, vector<8x512xf32>
      %333 = arith.truncf %327 : vector<8x128xf32> to vector<8x128xbf16>
      %cst_144 = arith.constant dense<0.000000e+00> : vector<8x512xf32>
      %334 = tpu.matmul %333, %20, %cst_144 {dimension_numbers = #tpu.dot_dimension_numbers<[1], [0], [0], [1], [0, 0, 1, 1], [], []>} : vector<8x128xbf16>, vector<128x512xbf16>, vector<8x512xf32> -> vector<8x512xf32>
      %335 = arith.addf %332, %334 : vector<8x512xf32>
      %336 = vector.extract_strided_slice %335 {offsets = [0, 0], sizes = [8, 128], strides = [1, 1]} : vector<8x512xf32> to vector<8x128xf32>
      %cst_145 = arith.constant 5.000000e-01 : f32
      %337 = vector.broadcast %cst_145 : f32 to vector<8x128xf32>
      %338 = arith.mulf %337, %336 : vector<8x128xf32>
      %339 = math.tanh %338 : vector<8x128xf32>
      %cst_146 = arith.constant 5.000000e-01 : f32
      %340 = vector.broadcast %cst_146 : f32 to vector<8x128xf32>
      %341 = arith.mulf %340, %339 : vector<8x128xf32>
      %cst_147 = arith.constant 5.000000e-01 : f32
      %342 = vector.broadcast %cst_147 : f32 to vector<8x128xf32>
      %343 = arith.addf %341, %342 : vector<8x128xf32>
      %344 = vector.extract_strided_slice %335 {offsets = [0, 128], sizes = [8, 128], strides = [1, 1]} : vector<8x512xf32> to vector<8x128xf32>
      %cst_148 = arith.constant 5.000000e-01 : f32
      %345 = vector.broadcast %cst_148 : f32 to vector<8x128xf32>
      %346 = arith.mulf %345, %344 : vector<8x128xf32>
      %347 = math.tanh %346 : vector<8x128xf32>
      %cst_149 = arith.constant 5.000000e-01 : f32
      %348 = vector.broadcast %cst_149 : f32 to vector<8x128xf32>
      %349 = arith.mulf %348, %347 : vector<8x128xf32>
      %cst_150 = arith.constant 5.000000e-01 : f32
      %350 = vector.broadcast %cst_150 : f32 to vector<8x128xf32>
      %351 = arith.addf %349, %350 : vector<8x128xf32>
      %352 = vector.extract_strided_slice %335 {offsets = [0, 256], sizes = [8, 128], strides = [1, 1]} : vector<8x512xf32> to vector<8x128xf32>
      %353 = math.tanh %352 : vector<8x128xf32>
      %354 = vector.extract_strided_slice %335 {offsets = [0, 384], sizes = [8, 128], strides = [1, 1]} : vector<8x512xf32> to vector<8x128xf32>
      %cst_151 = arith.constant 5.000000e-01 : f32
      %355 = vector.broadcast %cst_151 : f32 to vector<8x128xf32>
      %356 = arith.mulf %355, %354 : vector<8x128xf32>
      %357 = math.tanh %356 : vector<8x128xf32>
      %cst_152 = arith.constant 5.000000e-01 : f32
      %358 = vector.broadcast %cst_152 : f32 to vector<8x128xf32>
      %359 = arith.mulf %358, %357 : vector<8x128xf32>
      %cst_153 = arith.constant 5.000000e-01 : f32
      %360 = vector.broadcast %cst_153 : f32 to vector<8x128xf32>
      %361 = arith.addf %359, %360 : vector<8x128xf32>
      %362 = arith.mulf %351, %328 : vector<8x128xf32>
      %363 = arith.mulf %343, %353 : vector<8x128xf32>
      %364 = arith.addf %362, %363 : vector<8x128xf32>
      %365 = math.tanh %364 : vector<8x128xf32>
      %366 = arith.mulf %361, %365 : vector<8x128xf32>
      %367 = arith.addi %0, %c6_i32 : i32
      %368 = vector.broadcast %367 : i32 to vector<8x1xi32>
      %369 = arith.cmpi sgt, %19, %368 : vector<8x1xi32>
      %370 = vector.shape_cast %369 : vector<8x1xi1> to vector<8x1xi1>
      %371 = vector.broadcast %370 : vector<8x1xi1> to vector<8x128xi1>
      %372 = arith.select %371, %366, %327 : vector<8x128xi1>, vector<8x128xf32>
      %c0_154 = arith.constant 0 : index
      %c0_155 = arith.constant 0 : index
      %373 = vector.load %arg9[%c0_154, %c0_155] : memref<8x128xf32, #tpu.memory_space<vmem>>, vector<8x128xf32>
      tpu.vector_store %arg9[%c0_154, %c0_155], %372 {strides = array<i32>} : memref<8x128xf32, #tpu.memory_space<vmem>>, vector<8x128xf32>,
      %374 = vector.shape_cast %369 : vector<8x1xi1> to vector<8x1xi1>
      %375 = vector.broadcast %374 : vector<8x1xi1> to vector<8x128xi1>
      %376 = arith.select %375, %364, %328 : vector<8x128xi1>, vector<8x128xf32>
      %c0_156 = arith.constant 0 : index
      %c0_157 = arith.constant 0 : index
      %377 = vector.load %arg10[%c0_156, %c0_157] : memref<8x128xf32, #tpu.memory_space<vmem>>, vector<8x128xf32>
      tpu.vector_store %arg10[%c0_156, %c0_157], %376 {strides = array<i32>} : memref<8x128xf32, #tpu.memory_space<vmem>>, vector<8x128xf32>,
      %c7_i32 = arith.constant 7 : i32
      %c0_158 = arith.constant 0 : index
      %c0_159 = arith.constant 0 : index
      %378 = vector.load %arg9[%c0_158, %c0_159] : memref<8x128xf32, #tpu.memory_space<vmem>>, vector<8x128xf32>
      %c0_160 = arith.constant 0 : index
      %c0_161 = arith.constant 0 : index
      %379 = vector.load %arg10[%c0_160, %c0_161] : memref<8x128xf32, #tpu.memory_space<vmem>>, vector<8x128xf32>
      %c8_i32_162 = arith.constant 8 : i32
      %380 = arith.muli %c7_i32, %c8_i32_162 : i32
      %381 = tpu.assume_multiple %380, 8 : i32
      %382 = arith.index_cast %381 : i32 to index
      %c0_163 = arith.constant 0 : index
      %383 = vector.load %arg11[%382, %c0_163] : memref<64x512xf32, #tpu.memory_space<vmem>>, vector<8x512xf32>
      %384 = arith.truncf %378 : vector<8x128xf32> to vector<8x128xbf16>
      %cst_164 = arith.constant dense<0.000000e+00> : vector<8x512xf32>
      %385 = tpu.matmul %384, %20, %cst_164 {dimension_numbers = #tpu.dot_dimension_numbers<[1], [0], [0], [1], [0, 0, 1, 1], [], []>} : vector<8x128xbf16>, vector<128x512xbf16>, vector<8x512xf32> -> vector<8x512xf32>
      %386 = arith.addf %383, %385 : vector<8x512xf32>
      %387 = vector.extract_strided_slice %386 {offsets = [0, 0], sizes = [8, 128], strides = [1, 1]} : vector<8x512xf32> to vector<8x128xf32>
      %cst_165 = arith.constant 5.000000e-01 : f32
      %388 = vector.broadcast %cst_165 : f32 to vector<8x128xf32>
      %389 = arith.mulf %388, %387 : vector<8x128xf32>
      %390 = math.tanh %389 : vector<8x128xf32>
      %cst_166 = arith.constant 5.000000e-01 : f32
      %391 = vector.broadcast %cst_166 : f32 to vector<8x128xf32>
      %392 = arith.mulf %391, %390 : vector<8x128xf32>
      %cst_167 = arith.constant 5.000000e-01 : f32
      %393 = vector.broadcast %cst_167 : f32 to vector<8x128xf32>
      %394 = arith.addf %392, %393 : vector<8x128xf32>
      %395 = vector.extract_strided_slice %386 {offsets = [0, 128], sizes = [8, 128], strides = [1, 1]} : vector<8x512xf32> to vector<8x128xf32>
      %cst_168 = arith.constant 5.000000e-01 : f32
      %396 = vector.broadcast %cst_168 : f32 to vector<8x128xf32>
      %397 = arith.mulf %396, %395 : vector<8x128xf32>
      %398 = math.tanh %397 : vector<8x128xf32>
      %cst_169 = arith.constant 5.000000e-01 : f32
      %399 = vector.broadcast %cst_169 : f32 to vector<8x128xf32>
      %400 = arith.mulf %399, %398 : vector<8x128xf32>
      %cst_170 = arith.constant 5.000000e-01 : f32
      %401 = vector.broadcast %cst_170 : f32 to vector<8x128xf32>
      %402 = arith.addf %400, %401 : vector<8x128xf32>
      %403 = vector.extract_strided_slice %386 {offsets = [0, 256], sizes = [8, 128], strides = [1, 1]} : vector<8x512xf32> to vector<8x128xf32>
      %404 = math.tanh %403 : vector<8x128xf32>
      %405 = vector.extract_strided_slice %386 {offsets = [0, 384], sizes = [8, 128], strides = [1, 1]} : vector<8x512xf32> to vector<8x128xf32>
      %cst_171 = arith.constant 5.000000e-01 : f32
      %406 = vector.broadcast %cst_171 : f32 to vector<8x128xf32>
      %407 = arith.mulf %406, %405 : vector<8x128xf32>
      %408 = math.tanh %407 : vector<8x128xf32>
      %cst_172 = arith.constant 5.000000e-01 : f32
      %409 = vector.broadcast %cst_172 : f32 to vector<8x128xf32>
      %410 = arith.mulf %409, %408 : vector<8x128xf32>
      %cst_173 = arith.constant 5.000000e-01 : f32
      %411 = vector.broadcast %cst_173 : f32 to vector<8x128xf32>
      %412 = arith.addf %410, %411 : vector<8x128xf32>
      %413 = arith.mulf %402, %379 : vector<8x128xf32>
      %414 = arith.mulf %394, %404 : vector<8x128xf32>
      %415 = arith.addf %413, %414 : vector<8x128xf32>
      %416 = math.tanh %415 : vector<8x128xf32>
      %417 = arith.mulf %412, %416 : vector<8x128xf32>
      %418 = arith.addi %0, %c7_i32 : i32
      %419 = vector.broadcast %418 : i32 to vector<8x1xi32>
      %420 = arith.cmpi sgt, %19, %419 : vector<8x1xi32>
      %421 = vector.shape_cast %420 : vector<8x1xi1> to vector<8x1xi1>
      %422 = vector.broadcast %421 : vector<8x1xi1> to vector<8x128xi1>
      %423 = arith.select %422, %417, %378 : vector<8x128xi1>, vector<8x128xf32>
      %c0_174 = arith.constant 0 : index
      %c0_175 = arith.constant 0 : index
      %424 = vector.load %arg9[%c0_174, %c0_175] : memref<8x128xf32, #tpu.memory_space<vmem>>, vector<8x128xf32>
      tpu.vector_store %arg9[%c0_174, %c0_175], %423 {strides = array<i32>} : memref<8x128xf32, #tpu.memory_space<vmem>>, vector<8x128xf32>,
      %425 = vector.shape_cast %420 : vector<8x1xi1> to vector<8x1xi1>
      %426 = vector.broadcast %425 : vector<8x1xi1> to vector<8x128xi1>
      %427 = arith.select %426, %415, %379 : vector<8x128xi1>, vector<8x128xf32>
      %c0_176 = arith.constant 0 : index
      %c0_177 = arith.constant 0 : index
      %428 = vector.load %arg10[%c0_176, %c0_177] : memref<8x128xf32, #tpu.memory_space<vmem>>, vector<8x128xf32>
      tpu.vector_store %arg10[%c0_176, %c0_177], %427 {strides = array<i32>} : memref<8x128xf32, #tpu.memory_space<vmem>>, vector<8x128xf32>,
      %c8_i32_178 = arith.constant 8 : i32
    } else {
    }
    %c0_i32_2 = arith.constant 0 : i32
    %8 = arith.cmpi eq, %arg1, %c0_i32_2 : i32
    %9 = arith.extui %8 : i1 to i32
    %c0_i32_3 = arith.constant 0 : i32
    %10 = arith.cmpi ne, %9, %c0_i32_3 : i32
    scf.if %10 {
      %c0_4 = arith.constant 0 : index
      %c0_5 = arith.constant 0 : index
      %11 = vector.load %arg9[%c0_4, %c0_5] : memref<8x128xf32, #tpu.memory_space<vmem>>, vector<8x128xf32>
      %c0_6 = arith.constant 0 : index
      %c0_7 = arith.constant 0 : index
      %12 = vector.load %arg8[%c0_6, %c0_7] : memref<8x128xf32, #tpu.memory_space<vmem>>, vector<8x128xf32>
      tpu.vector_store %arg8[%c0_6, %c0_7], %11 {strides = array<i32>} : memref<8x128xf32, #tpu.memory_space<vmem>>, vector<8x128xf32>,
    } else {
    }
    return
  }
  func.func @transform_0(%arg0: i32, %arg1: i32, %arg2: memref<1xi32, #tpu.memory_space<smem>>) -> (i32, i32) {
    %c0_i32 = arith.constant 0 : i32
    %c0_i32_0 = arith.constant 0 : i32
    return %arg0, %c0_i32 : i32, i32
  }
  func.func @transform_1(%arg0: i32, %arg1: i32, %arg2: memref<1xi32, #tpu.memory_space<smem>>) -> (i32, i32, i32) {
    %c0_i32 = arith.constant 0 : i32
    %c0_i32_0 = arith.constant 0 : i32
    return %arg0, %arg1, %c0_i32 : i32, i32, i32
  }
  func.func @transform_2(%arg0: i32, %arg1: i32, %arg2: memref<1xi32, #tpu.memory_space<smem>>) -> (i32, i32) {
    %c0_i32 = arith.constant 0 : i32
    %c0_i32_0 = arith.constant 0 : i32
    %c0_i32_1 = arith.constant 0 : i32
    return %c0_i32, %c0_i32_0 : i32, i32
  }
  func.func @transform_3(%arg0: i32, %arg1: i32, %arg2: memref<1xi32, #tpu.memory_space<smem>>) -> (i32, i32) {
    %c0_i32 = arith.constant 0 : i32
    %c0_i32_0 = arith.constant 0 : i32
    %c0_i32_1 = arith.constant 0 : i32
    return %c0_i32, %c0_i32_0 : i32, i32
  }
  func.func @transform_4(%arg0: i32, %arg1: i32, %arg2: memref<1xi32, #tpu.memory_space<smem>>) -> (i32, i32) {
    %c0_i32 = arith.constant 0 : i32
    %c0_i32_0 = arith.constant 0 : i32
    %c0_i32_1 = arith.constant 0 : i32
    return %c0_i32, %c0_i32_0 : i32, i32
  }
  func.func @transform_5(%arg0: i32, %arg1: i32, %arg2: memref<1xi32, #tpu.memory_space<smem>>) -> (i32, i32) {
    %c0_i32 = arith.constant 0 : i32
    %c0_i32_0 = arith.constant 0 : i32
    return %arg0, %c0_i32 : i32, i32
  }
}

</mosaic_0001>

<llo_original>
// kernel: lstm_classifier_forward.1
$region0: #{lstm_classifier_forward.1}
  #allocation0 [shape = 'u32[]', space=smem, size = 0x4, offset = 0x4, fixed_abs, tag = 'smem constant byte address 0x4 - core index']
  #allocation1 [shape = 'u32[72,128]{1,0:T(1,128)}', space=vmem, size = 0x9000, scoped, tag = 'internal scratch']
  #allocation2 [shape = 'f32[8,128]{1,0:T(8,128)}', space=vmem, size = 0x1000, scoped, tag = 'scratch operand']
  #allocation3 [shape = 'f32[8,128]{1,0:T(8,128)}', space=vmem, size = 0x1000, scoped, tag = 'scratch operand']
  #allocation4 [shape = 'f32[64,512]{1,0:T(8,128)}', space=vmem, size = 0x20000, scoped, tag = 'scratch operand']
  #allocation5 [shape = 's32[1]{0}', space=sflag, size = 0x4, scoped, tag = 'scoped memory for lstm_classifier_forward.1']
  #allocation6 [shape = 's32[1]{0:T(128)S(6)}', space=smem, size = 0x200, scoped, tag = 'prefetched SMEM operand 0']
  %s0 = inlined_call_operand.<no memory space> [shape: s32[1], index: 0, kind: input, shape index: {}]
  %s1 = inlined_call_operand.vmem [shape: s32[8,1], index: 1, kind: input, shape index: {}]
  %s2 = inlined_call_operand.vmem [shape: bf16[1,64,16], index: 2, kind: input, shape index: {}]
  %s3 = inlined_call_operand.vmem [shape: bf16[16,512], index: 3, kind: input, shape index: {}]
  %s4 = inlined_call_operand.vmem [shape: f32[1,512], index: 4, kind: input, shape index: {}]
  %s5 = inlined_call_operand.vmem [shape: bf16[128,512], index: 5, kind: input, shape index: {}]
  %s6 = inlined_call_operand.vmem [shape: f32[8,128], index: 6, kind: output, shape index: {}]
  %s7 = sld [smem:[#allocation0]]
  $region42: #{lstm_classifier_forward.1} parent=0
    _
  %s9 = ssub.s32 1, %s7
  %s10 = scalar_select 0, %s9, %s7
  %11 = sst [smem:[#allocation6]] %s0
  // Predicated region
  $region2: #{lstm_classifier_forward.1} parent=0 // pred_check
    _
  $region3: #{lstm_classifier_forward.1} parent=0 // pred_check_branch
    %13 = sbr.rel (0) target = $region5
  $region4: #{lstm_classifier_forward.1} parent=0 // pred_region
    _
  $region5: #{lstm_classifier_forward.1} parent=0 // pred_fallthru
    _
  // Predicated region
  $region6: #{lstm_classifier_forward.1} parent=0 // pred_check
    _
  $region7: #{lstm_classifier_forward.1} parent=0 // pred_check_branch
    %15 = sbr.rel (0) target = $region9
  $region8: #{lstm_classifier_forward.1} parent=0 // pred_region
    _
  $region9: #{lstm_classifier_forward.1} parent=0 // pred_fallthru
    _
  // Predicated region
  $region10: #{lstm_classifier_forward.1} parent=0 // pred_check
    _
  $region11: #{lstm_classifier_forward.1} parent=0 // pred_check_branch
    %17 = sbr.rel (0) target = $region13
  $region12: #{lstm_classifier_forward.1} parent=0 // pred_region
    _
  $region13: #{lstm_classifier_forward.1} parent=0 // pred_fallthru
    _
  // Predicated region
  $region14: #{lstm_classifier_forward.1} parent=0 // pred_check
    _
  $region15: #{lstm_classifier_forward.1} parent=0 // pred_check_branch
    %19 = sbr.rel (0) target = $region17
  $region16: #{lstm_classifier_forward.1} parent=0 // pred_region
    _
  $region17: #{lstm_classifier_forward.1} parent=0 // pred_fallthru
    _
  // Predicated region
  $region18: #{lstm_classifier_forward.1} parent=0 // pred_check
    _
  $region19: #{lstm_classifier_forward.1} parent=0 // pred_check_branch
    %21 = sbr.rel (0) target = $region21
  $region20: #{lstm_classifier_forward.1} parent=0 // pred_region
    _
  $region21: #{lstm_classifier_forward.1} parent=0 // pred_fallthru
    _
  %s23 = smul.u32 0, 8
  %p24 = scmp.eq.s32.totalorder 0, 0
  // Predicated region
  $region22: #{lstm_classifier_forward.1} parent=0 // pred_check
    %p25 = pneg %p24
  $region23: #{lstm_classifier_forward.1} parent=0 // pred_check_branch
    %27 = sbr.rel (%p25) target = $region25
  $region24: #{lstm_classifier_forward.1} parent=0 // pred_region
    %28 = vst [vmem:[#allocation2] sm:$0xff] 0.0
    %29 = vst [vmem:[#allocation3] sm:$0xff] 0.0
  $region25: #{lstm_classifier_forward.1} parent=0 // pred_fallthru
    _
  %s30 = sld [smem:[#allocation6]]
  %p31 = scmp.lt.s32.totalorder %s23, %s30
  // Predicated region
  $region26: #{lstm_classifier_forward.1} parent=0 // pred_check
    %p32 = pneg %p31
  $region27: #{lstm_classifier_forward.1} parent=0 // pred_check_branch
    %34 = sbr.rel (%p32) target = $region29
  $region28: #{lstm_classifier_forward.1} parent=0 // pred_region
    %v35 = vld [vmem:[%s2] sm:$0xf]
    %v36 = vld [vmem:[%s2 + $0x4] sm:$0xf]
    %v37 = vld [vmem:[%s2 + $0x8] sm:$0xf]
    %v38 = vld [vmem:[%s2 + $0xc] sm:$0xf]
    %v39 = vld [vmem:[%s2 + $0x10] sm:$0xf]
    %v40 = vld [vmem:[%s2 + $0x14] sm:$0xf]
    %v41 = vld [vmem:[%s2 + $0x18] sm:$0xf]
    %v42 = vld [vmem:[%s2 + $0x1c] sm:$0xf]
    %v43 = vld [vmem:[%s3] sm:$0xff]
    %v44 = vld [vmem:[%s3 + $0x8] sm:$0xff]
    %v45 = vld [vmem:[%s3 + $0x10] sm:$0xff]
    %v46 = vld [vmem:[%s3 + $0x18] sm:$0xff]
    %v47 = vld [vmem:[%s4] sm:$0xf]
    %v49 = vperm.slane %v47, 0
    %v50 = vperm.slane %v47, 1
    %v51 = vperm.slane %v47, 2
    %v52 = vperm.slane %v47, 3
    %v65 = vunpack.c.l.b16 %v35
    %v66 = vunpack.c.l.b16 %v36
    %v67 = vunpack.c.l.b16 %v37
    %v68 = vunpack.c.l.b16 %v38
    %v69 = vunpack.c.l.b16 %v39
    %v70 = vunpack.c.l.b16 %v40
    %v71 = vunpack.c.l.b16 %v41
    %v72 = vunpack.c.l.b16 %v42
    %v73 = vpack.c.b16 %v66, %v65
    %v74 = vpack.c.b16 %v68, %v67
    %v75 = vpack.c.b16 %v70, %v69
    %v76 = vpack.c.b16 %v72, %v71
    %v81 = vunpack.c.l.b16 %v43
    %v82 = vunpack.c.h.b16 %v43
    %v83 = vunpack.c.l.b16 %v44
    %v84 = vunpack.c.h.b16 %v44
    %v85 = vunpack.c.l.b16 %v45
    %v86 = vunpack.c.h.b16 %v45
    %v87 = vunpack.c.l.b16 %v46
    %v88 = vunpack.c.h.b16 %v46
    %v89 = vpack.c.b16 %v85, %v81
    %v90 = vpack.c.b16 %v86, %v82
    %v91 = vpack.c.b16 %v87, %v83
    %v92 = vpack.c.b16 %v88, %v84
    %vm97 = vcmask 130048
    %v99 = vsel %vm97, %v73, 0
    %v102 = vsel %vm97, %v74, 0
    %v105 = vsel %vm97, %v75, 0
    %v108 = vsel %vm97, %v76, 0
    %110 = vmatpush.bf16.msra.mxu0 0
    %111 = vmatpush.bf16.msra.mxu0 0
    %112 = vmatpush.bf16.msra.mxu0 0
    %113 = vmatpush.bf16.msra.mxu0 0
    %114 = vmatpush.bf16.msra.mxu0 0
    %115 = vmatpush.bf16.msra.mxu0 0
    %116 = vmatpush.bf16.msra.mxu0 0
    %117 = vmatpush.bf16.msra.mxu0 %v89
    %118 = vmatmul.bf16.gmra.mxu0 %v99
    %v119 = vpop.f32.mrf.mxu0
    %v120 = vadd.f32 %v49, %v119
    %v121 = vpop.f32.mrf.mxu0
    %v122 = vadd.f32 %v49, %v121
    %123 = vmatmul.bf16.gmra.mxu0 %v102
    %v124 = vpop.f32.mrf.mxu0
    %v125 = vadd.f32 %v49, %v124
    %v126 = vpop.f32.mrf.mxu0
    %v127 = vadd.f32 %v49, %v126
    %128 = vmatmul.bf16.gmra.mxu0 %v105
    %v129 = vpop.f32.mrf.mxu0
    %v130 = vadd.f32 %v49, %v129
    %v131 = vpop.f32.mrf.mxu0
    %v132 = vadd.f32 %v49, %v131
    %133 = vmatmul.bf16.gmra.mxu0 %v108
    %v134 = vpop.f32.mrf.mxu0
    %v135 = vadd.f32 %v49, %v134
    %v136 = vpop.f32.mrf.mxu0
    %v137 = vadd.f32 %v49, %v136
    %138 = vdwg.mxu0
    %139 = vmatpush.bf16.msra.mxu0 0
    %140 = vmatpush.bf16.msra.mxu0 0
    %141 = vmatpush.bf16.msra.mxu0 0
    %142 = vmatpush.bf16.msra.mxu0 0
    %143 = vmatpush.bf16.msra.mxu0 0
    %144 = vmatpush.bf16.msra.mxu0 0
    %145 = vmatpush.bf16.msra.mxu0 0
    %146 = vmatpush.bf16.msra.mxu0 %v90
    %147 = vmatmul.bf16.gmra.mxu0 %v99
    %v148 = vpop.f32.mrf.mxu0
    %v149 = vadd.f32 %v50, %v148
    %v150 = vpop.f32.mrf.mxu0
    %v151 = vadd.f32 %v50, %v150
    %152 = vmatmul.bf16.gmra.mxu0 %v102
    %v153 = vpop.f32.mrf.mxu0
    %v154 = vadd.f32 %v50, %v153
    %v155 = vpop.f32.mrf.mxu0
    %v156 = vadd.f32 %v50, %v155
    %157 = vmatmul.bf16.gmra.mxu0 %v105
    %v158 = vpop.f32.mrf.mxu0
    %v159 = vadd.f32 %v50, %v158
    %v160 = vpop.f32.mrf.mxu0
    %v161 = vadd.f32 %v50, %v160
    %162 = vmatmul.bf16.gmra.mxu0 %v108
    %v163 = vpop.f32.mrf.mxu0
    %v164 = vadd.f32 %v50, %v163
    %v165 = vpop.f32.mrf.mxu0
    %v166 = vadd.f32 %v50, %v165
    %167 = vdwg.mxu0
    %168 = vmatpush.bf16.msra.mxu0 0
    %169 = vmatpush.bf16.msra.mxu0 0
    %170 = vmatpush.bf16.msra.mxu0 0
    %171 = vmatpush.bf16.msra.mxu0 0
    %172 = vmatpush.bf16.msra.mxu0 0
    %173 = vmatpush.bf16.msra.mxu0 0
    %174 = vmatpush.bf16.msra.mxu0 0
    %175 = vmatpush.bf16.msra.mxu0 %v91
    %176 = vmatmul.bf16.gmra.mxu0 %v99
    %v177 = vpop.f32.mrf.mxu0
    %v178 = vadd.f32 %v51, %v177
    %v179 = vpop.f32.mrf.mxu0
    %v180 = vadd.f32 %v51, %v179
    %181 = vmatmul.bf16.gmra.mxu0 %v102
    %v182 = vpop.f32.mrf.mxu0
    %v183 = vadd.f32 %v51, %v182
    %v184 = vpop.f32.mrf.mxu0
    %v185 = vadd.f32 %v51, %v184
    %186 = vmatmul.bf16.gmra.mxu0 %v105
    %v187 = vpop.f32.mrf.mxu0
    %v188 = vadd.f32 %v51, %v187
    %v189 = vpop.f32.mrf.mxu0
    %v190 = vadd.f32 %v51, %v189
    %191 = vmatmul.bf16.gmra.mxu0 %v108
    %v192 = vpop.f32.mrf.mxu0
    %v193 = vadd.f32 %v51, %v192
    %v194 = vpop.f32.mrf.mxu0
    %v195 = vadd.f32 %v51, %v194
    %196 = vdwg.mxu0
    %197 = vmatpush.bf16.msra.mxu0 0
    %198 = vmatpush.bf16.msra.mxu0 0
    %199 = vmatpush.bf16.msra.mxu0 0
    %200 = vmatpush.bf16.msra.mxu0 0
    %201 = vmatpush.bf16.msra.mxu0 0
    %202 = vmatpush.bf16.msra.mxu0 0
    %203 = vmatpush.bf16.msra.mxu0 0
    %204 = vmatpush.bf16.msra.mxu0 %v92
    %205 = vmatmul.bf16.gmra.mxu0 %v99
    %v206 = vpop.f32.mrf.mxu0
    %v207 = vadd.f32 %v52, %v206
    %v208 = vpop.f32.mrf.mxu0
    %v209 = vadd.f32 %v52, %v208
    %210 = vmatmul.bf16.gmra.mxu0 %v102
    %v211 = vpop.f32.mrf.mxu0
    %v212 = vadd.f32 %v52, %v211
    %v213 = vpop.f32.mrf.mxu0
    %v214 = vadd.f32 %v52, %v213
    %215 = vmatmul.bf16.gmra.mxu0 %v105
    %v216 = vpop.f32.mrf.mxu0
    %v217 = vadd.f32 %v52, %v216
    %v218 = vpop.f32.mrf.mxu0
    %v219 = vadd.f32 %v52, %v218
    %220 = vmatmul.bf16.gmra.mxu0 %v108
    %v221 = vpop.f32.mrf.mxu0
    %v222 = vadd.f32 %v52, %v221
    %v223 = vpop.f32.mrf.mxu0
    %v224 = vadd.f32 %v52, %v223
    %225 = vdwg.mxu0
    %226 = vst [vmem:[#allocation4] sm:$0xff] %v120
    %227 = vst [vmem:[#allocation4 + $0x8] sm:$0xff] %v149
    %228 = vst [vmem:[#allocation4 + $0x10] sm:$0xff] %v178
    %229 = vst [vmem:[#allocation4 + $0x18] sm:$0xff] %v207
    %230 = vst [vmem:[#allocation4 + $0x20] sm:$0xff] %v122
    %231 = vst [vmem:[#allocation4 + $0x28] sm:$0xff] %v151
    %232 = vst [vmem:[#allocation4 + $0x30] sm:$0xff] %v180
    %233 = vst [vmem:[#allocation4 + $0x38] sm:$0xff] %v209
    %234 = vst [vmem:[#allocation4 + $0x40] sm:$0xff] %v125
    %235 = vst [vmem:[#allocation4 + $0x48] sm:$0xff] %v154
    %236 = vst [vmem:[#allocation4 + $0x50] sm:$0xff] %v183
    %237 = vst [vmem:[#allocation4 + $0x58] sm:$0xff] %v212
    %238 = vst [vmem:[#allocation4 + $0x60] sm:$0xff] %v127
    %239 = vst [vmem:[#allocation4 + $0x68] sm:$0xff] %v156
    %240 = vst [vmem:[#allocation4 + $0x70] sm:$0xff] %v185
    %241 = vst [vmem:[#allocation4 + $0x78] sm:$0xff] %v214
    %242 = vst [vmem:[#allocation4 + $0x80] sm:$0xff] %v130
    %243 = vst [vmem:[#allocation4 + $0x88] sm:$0xff] %v159
    %244 = vst [vmem:[#allocation4 + $0x90] sm:$0xff] %v188
    %245 = vst [vmem:[#allocation4 + $0x98] sm:$0xff] %v217
    %246 = vst [vmem:[#allocation4 + $0xa0] sm:$0xff] %v132
    %247 = vst [vmem:[#allocation4 + $0xa8] sm:$0xff] %v161
    %248 = vst [vmem:[#allocation4 + $0xb0] sm:$0xff] %v190
    %249 = vst [vmem:[#allocation4 + $0xb8] sm:$0xff] %v219
    %250 = vst [vmem:[#allocation4 + $0xc0] sm:$0xff] %v135
    %251 = vst [vmem:[#allocation4 + $0xc8] sm:$0xff] %v164
    %252 = vst [vmem:[#allocation4 + $0xd0] sm:$0xff] %v193
    %253 = vst [vmem:[#allocation4 + $0xd8] sm:$0xff] %v222
    %254 = vst [vmem:[#allocation4 + $0xe0] sm:$0xff] %v137
    %255 = vst [vmem:[#allocation4 + $0xe8] sm:$0xff] %v166
    %256 = vst [vmem:[#allocation4 + $0xf0] sm:$0xff] %v195
    %257 = vst [vmem:[#allocation4 + $0xf8] sm:$0xff] %v224
    %v258 = vld [vmem:[%s1] sm:$0xff]
    %v259 = vld [vmem:[%s5] sm:$0xff]
    %v260 = vld [vmem:[%s5 + $0x8] sm:$0xff]
    %v261 = vld [vmem:[%s5 + $0x10] sm:$0xff]
    %v262 = vld [vmem:[%s5 + $0x18] sm:$0xff]
    %v263 = vld [vmem:[%s5 + $0x20] sm:$0xff]
    %v264 = vld [vmem:[%s5 + $0x28] sm:$0xff]
    %v265 = vld [vmem:[%s5 + $0x30] sm:$0xff]
    %v266 = vld [vmem:[%s5 + $0x38] sm:$0xff]
    %v267 = vld [vmem:[%s5 + $0x40] sm:$0xff]
    %v268 = vld [vmem:[%s5 + $0x48] sm:$0xff]
    %v269 = vld [vmem:[%s5 + $0x50] sm:$0xff]
    %v270 = vld [vmem:[%s5 + $0x58] sm:$0xff]
    %v271 = vld [vmem:[%s5 + $0x60] sm:$0xff]
    %v272 = vld [vmem:[%s5 + $0x68] sm:$0xff]
    %v273 = vld [vmem:[%s5 + $0x70] sm:$0xff]
    %v274 = vld [vmem:[%s5 + $0x78] sm:$0xff]
    %v275 = vld [vmem:[%s5 + $0x80] sm:$0xff]
    %v276 = vld [vmem:[%s5 + $0x88] sm:$0xff]
    %v277 = vld [vmem:[%s5 + $0x90] sm:$0xff]
    %v278 = vld [vmem:[%s5 + $0x98] sm:$0xff]
    %v279 = vld [vmem:[%s5 + $0xa0] sm:$0xff]
    %v280 = vld [vmem:[%s5 + $0xa8] sm:$0xff]
    %v281 = vld [vmem:[%s5 + $0xb0] sm:$0xff]
    %v282 = vld [vmem:[%s5 + $0xb8] sm:$0xff]
    %v283 = vld [vmem:[%s5 + $0xc0] sm:$0xff]
    %v284 = vld [vmem:[%s5 + $0xc8] sm:$0xff]
    %v285 = vld [vmem:[%s5 + $0xd0] sm:$0xff]
    %v286 = vld [vmem:[%s5 + $0xd8] sm:$0xff]
    %v287 = vld [vmem:[%s5 + $0xe0] sm:$0xff]
    %v288 = vld [vmem:[%s5 + $0xe8] sm:$0xff]
    %v289 = vld [vmem:[%s5 + $0xf0] sm:$0xff]
    %v290 = vld [vmem:[%s5 + $0xf8] sm:$0xff]
    %v291 = vld [vmem:[#allocation2] sm:$0xff]
    %v292 = vld [vmem:[#allocation3] sm:$0xff]
    %s293 = smul.u32 0, 4
    %s294 = smul.addr %s293, 8
    %s295 = scalar_lea.vmem [#allocation4], %s294
    %v296 = vld [vmem:[%s295] sm:$0xff]
    %v297 = vld [vmem:[%s295 + $0x8] sm:$0xff]
    %v298 = vld [vmem:[%s295 + $0x10] sm:$0xff]
    %v299 = vld [vmem:[%s295 + $0x18] sm:$0xff]
    %v300 = vpack.c.bf16 %v291, %v291
    %v333 = vunpack.c.l.b16 %v259
    %v334 = vunpack.c.h.b16 %v259
    %v335 = vunpack.c.l.b16 %v260
    %v336 = vunpack.c.h.b16 %v260
    %v337 = vunpack.c.l.b16 %v261
    %v338 = vunpack.c.h.b16 %v261
    %v339 = vunpack.c.l.b16 %v262
    %v340 = vunpack.c.h.b16 %v262
    %v341 = vunpack.c.l.b16 %v263
    %v342 = vunpack.c.h.b16 %v263
    %v343 = vunpack.c.l.b16 %v264
    %v344 = vunpack.c.h.b16 %v264
    %v345 = vunpack.c.l.b16 %v265
    %v346 = vunpack.c.h.b16 %v265
    %v347 = vunpack.c.l.b16 %v266
    %v348 = vunpack.c.h.b16 %v266
    %v349 = vunpack.c.l.b16 %v267
    %v350 = vunpack.c.h.b16 %v267
    %v351 = vunpack.c.l.b16 %v268
    %v352 = vunpack.c.h.b16 %v268
    %v353 = vunpack.c.l.b16 %v269
    %v354 = vunpack.c.h.b16 %v269
    %v355 = vunpack.c.l.b16 %v270
    %v356 = vunpack.c.h.b16 %v270
    %v357 = vunpack.c.l.b16 %v271
    %v358 = vunpack.c.h.b16 %v271
    %v359 = vunpack.c.l.b16 %v272
    %v360 = vunpack.c.h.b16 %v272
    %v361 = vunpack.c.l.b16 %v273
    %v362 = vunpack.c.h.b16 %v273
    %v363 = vunpack.c.l.b16 %v274
    %v364 = vunpack.c.h.b16 %v274
    %v365 = vunpack.c.l.b16 %v275
    %v366 = vunpack.c.h.b16 %v275
    %v367 = vunpack.c.l.b16 %v276
    %v368 = vunpack.c.h.b16 %v276
    %v369 = vunpack.c.l.b16 %v277
    %v370 = vunpack.c.h.b16 %v277
    %v371 = vunpack.c.l.b16 %v278
    %v372 = vunpack.c.h.b16 %v278
    %v373 = vunpack.c.l.b16 %v279
    %v374 = vunpack.c.h.b16 %v279
    %v375 = vunpack.c.l.b16 %v280
    %v376 = vunpack.c.h.b16 %v280
    %v377 = vunpack.c.l.b16 %v281
    %v378 = vunpack.c.h.b16 %v281
    %v379 = vunpack.c.l.b16 %v282
    %v380 = vunpack.c.h.b16 %v282
    %v381 = vunpack.c.l.b16 %v283
    %v382 = vunpack.c.h.b16 %v283
    %v383 = vunpack.c.l.b16 %v284
    %v384 = vunpack.c.h.b16 %v284
    %v385 = vunpack.c.l.b16 %v285
    %v386 = vunpack.c.h.b16 %v285
    %v387 = vunpack.c.l.b16 %v286
    %v388 = vunpack.c.h.b16 %v286
    %v389 = vunpack.c.l.b16 %v287
    %v390 = vunpack.c.h.b16 %v287
    %v391 = vunpack.c.l.b16 %v288
    %v392 = vunpack.c.h.b16 %v288
    %v393 = vunpack.c.l.b16 %v289
    %v394 = vunpack.c.h.b16 %v289
    %v395 = vunpack.c.l.b16 %v290
    %v396 = vunpack.c.h.b16 %v290
    %v397 = vpack.c.b16 %v337, %v333
    %v398 = vpack.c.b16 %v338, %v334
    %v399 = vpack.c.b16 %v339, %v335
    %v400 = vpack.c.b16 %v340, %v336
    %v401 = vpack.c.b16 %v345, %v341
    %v402 = vpack.c.b16 %v346, %v342
    %v403 = vpack.c.b16 %v347, %v343
    %v404 = vpack.c.b16 %v348, %v344
    %v405 = vpack.c.b16 %v353, %v349
    %v406 = vpack.c.b16 %v354, %v350
    %v407 = vpack.c.b16 %v355, %v351
    %v408 = vpack.c.b16 %v356, %v352
    %v409 = vpack.c.b16 %v361, %v357
    %v410 = vpack.c.b16 %v362, %v358
    %v411 = vpack.c.b16 %v363, %v359
    %v412 = vpack.c.b16 %v364, %v360
    %v413 = vpack.c.b16 %v369, %v365
    %v414 = vpack.c.b16 %v370, %v366
    %v415 = vpack.c.b16 %v371, %v367
    %v416 = vpack.c.b16 %v372, %v368
    %v417 = vpack.c.b16 %v377, %v373
    %v418 = vpack.c.b16 %v378, %v374
    %v419 = vpack.c.b16 %v379, %v375
    %v420 = vpack.c.b16 %v380, %v376
    %v421 = vpack.c.b16 %v385, %v381
    %v422 = vpack.c.b16 %v386, %v382
    %v423 = vpack.c.b16 %v387, %v383
    %v424 = vpack.c.b16 %v388, %v384
    %v425 = vpack.c.b16 %v393, %v389
    %v426 = vpack.c.b16 %v394, %v390
    %v427 = vpack.c.b16 %v395, %v391
    %v428 = vpack.c.b16 %v396, %v392
    %461 = vmatpush.bf16.msra.mxu0 %v425
    %462 = vmatpush.bf16.msra.mxu0 %v421
    %463 = vmatpush.bf16.msra.mxu0 %v417
    %464 = vmatpush.bf16.msra.mxu0 %v413
    %465 = vmatpush.bf16.msra.mxu0 %v409
    %466 = vmatpush.bf16.msra.mxu0 %v405
    %467 = vmatpush.bf16.msra.mxu0 %v401
    %468 = vmatpush.bf16.msra.mxu0 %v397
    %469 = vmatmul.bf16.gmra.mxu0 %v300
    %v470 = vpop.f32.mrf.mxu0
    %v471 = vadd.f32 0.0, %v470
    %v472 = vpop.f32.mrf.mxu0
    %473 = vdwg.mxu0
    %474 = vmatpush.bf16.msra.mxu0 %v426
    %475 = vmatpush.bf16.msra.mxu0 %v422
    %476 = vmatpush.bf16.msra.mxu0 %v418
    %477 = vmatpush.bf16.msra.mxu0 %v414
    %478 = vmatpush.bf16.msra.mxu0 %v410
    %479 = vmatpush.bf16.msra.mxu0 %v406
    %480 = vmatpush.bf16.msra.mxu0 %v402
    %481 = vmatpush.bf16.msra.mxu0 %v398
    %482 = vmatmul.bf16.gmra.mxu0 %v300
    %v483 = vpop.f32.mrf.mxu0
    %v484 = vadd.f32 0.0, %v483
    %v485 = vpop.f32.mrf.mxu0
    %486 = vdwg.mxu0
    %487 = vmatpush.bf16.msra.mxu0 %v427
    %488 = vmatpush.bf16.msra.mxu0 %v423
    %489 = vmatpush.bf16.msra.mxu0 %v419
    %490 = vmatpush.bf16.msra.mxu0 %v415
    %491 = vmatpush.bf16.msra.mxu0 %v411
    %492 = vmatpush.bf16.msra.mxu0 %v407
    %493 = vmatpush.bf16.msra.mxu0 %v403
    %494 = vmatpush.bf16.msra.mxu0 %v399
    %495 = vmatmul.bf16.gmra.mxu0 %v300
    %v496 = vpop.f32.mrf.mxu0
    %v497 = vadd.f32 0.0, %v496
    %v498 = vpop.f32.mrf.mxu0
    %499 = vdwg.mxu0
    %500 = vmatpush.bf16.msra.mxu0 %v428
    %501 = vmatpush.bf16.msra.mxu0 %v424
    %502 = vmatpush.bf16.msra.mxu0 %v420
    %503 = vmatpush.bf16.msra.mxu0 %v416
    %504 = vmatpush.bf16.msra.mxu0 %v412
    %505 = vmatpush.bf16.msra.mxu0 %v408
    %506 = vmatpush.bf16.msra.mxu0 %v404
    %507 = vmatpush.bf16.msra.mxu0 %v400
    %508 = vmatmul.bf16.gmra.mxu0 %v300
    %v509 = vpop.f32.mrf.mxu0
    %v510 = vadd.f32 0.0, %v509
    %v511 = vpop.f32.mrf.mxu0
    %512 = vdwg.mxu0
    %v513 = vadd.f32 %v296, %v471
    %v514 = vadd.f32 %v297, %v484
    %v515 = vadd.f32 %v298, %v497
    %v516 = vadd.f32 %v299, %v510
    %v517 = vmul.f32 %v513, 0.5
    %v518 = vtanh.pop %v517
    %v519 = vmul.f32 %v518, 0.5
    %v520 = vadd.f32 %v519, 0.5
    %v521 = vmul.f32 %v514, 0.5
    %v522 = vtanh.pop %v521
    %v523 = vmul.f32 %v522, 0.5
    %v524 = vadd.f32 %v523, 0.5
    %v525 = vtanh.pop %v515
    %v526 = vmul.f32 %v516, 0.5
    %v527 = vtanh.pop %v526
    %v528 = vmul.f32 %v527, 0.5
    %v529 = vadd.f32 %v528, 0.5
    %v530 = vmul.f32 %v524, %v292
    %v531 = vmul.f32 %v520, %v525
    %v532 = vadd.f32 %v530, %v531
    %v533 = vtanh.pop %v532
    %v534 = vmul.f32 %v529, %v533
    %v535 = vstv %s23
    %vm536 = vcmp.gt.s32.totalorder %v258, %v535
    %v537 = vsel %vm536, 1, 0
    %538 = vset.pattern.permute.xlu0 0
    %539 = vperm.xlu0 %538, %v537
    %v540 = vpop.permute.xlu0 %539
    %vm541 = vcmp.eq.s32.totalorder %v540, 1
    %v542 = vsel %vm541, %v534, %v291
    %543 = vst [vmem:[#allocation2] sm:$0xff] %v542
    %v544 = vsel %vm541, %v532, %v292
    %545 = vst [vmem:[#allocation3] sm:$0xff] %v544
    %v546 = vld [vmem:[#allocation2] sm:$0xff]
    %v547 = vld [vmem:[#allocation3] sm:$0xff]
    %s548 = smul.u32 1, 4
    %s549 = smul.addr %s548, 8
    %s550 = scalar_lea.vmem [#allocation4], %s549
    %v551 = vld [vmem:[%s550] sm:$0xff]
    %v552 = vld [vmem:[%s550 + $0x8] sm:$0xff]
    %v553 = vld [vmem:[%s550 + $0x10] sm:$0xff]
    %v554 = vld [vmem:[%s550 + $0x18] sm:$0xff]
    %v555 = vpack.c.bf16 %v546, %v546
    %556 = vmatpush.bf16.msra.mxu0 %v425
    %557 = vmatpush.bf16.msra.mxu0 %v421
    %558 = vmatpush.bf16.msra.mxu0 %v417
    %559 = vmatpush.bf16.msra.mxu0 %v413
    %560 = vmatpush.bf16.msra.mxu0 %v409
    %561 = vmatpush.bf16.msra.mxu0 %v405
    %562 = vmatpush.bf16.msra.mxu0 %v401
    %563 = vmatpush.bf16.msra.mxu0 %v397
    %564 = vmatmul.bf16.gmra.mxu0 %v555
    %v565 = vpop.f32.mrf.mxu0
    %v566 = vadd.f32 0.0, %v565
    %v567 = vpop.f32.mrf.mxu0
    %568 = vdwg.mxu0
    %569 = vmatpush.bf16.msra.mxu0 %v426
    %570 = vmatpush.bf16.msra.mxu0 %v422
    %571 = vmatpush.bf16.msra.mxu0 %v418
    %572 = vmatpush.bf16.msra.mxu0 %v414
    %573 = vmatpush.bf16.msra.mxu0 %v410
    %574 = vmatpush.bf16.msra.mxu0 %v406
    %575 = vmatpush.bf16.msra.mxu0 %v402
    %576 = vmatpush.bf16.msra.mxu0 %v398
    %577 = vmatmul.bf16.gmra.mxu0 %v555
    %v578 = vpop.f32.mrf.mxu0
    %v579 = vadd.f32 0.0, %v578
    %v580 = vpop.f32.mrf.mxu0
    %581 = vdwg.mxu0
    %582 = vmatpush.bf16.msra.mxu0 %v427
    %583 = vmatpush.bf16.msra.mxu0 %v423
    %584 = vmatpush.bf16.msra.mxu0 %v419
    %585 = vmatpush.bf16.msra.mxu0 %v415
    %586 = vmatpush.bf16.msra.mxu0 %v411
    %587 = vmatpush.bf16.msra.mxu0 %v407
    %588 = vmatpush.bf16.msra.mxu0 %v403
    %589 = vmatpush.bf16.msra.mxu0 %v399
    %590 = vmatmul.bf16.gmra.mxu0 %v555
    %v591 = vpop.f32.mrf.mxu0
    %v592 = vadd.f32 0.0, %v591
    %v593 = vpop.f32.mrf.mxu0
    %594 = vdwg.mxu0
    %595 = vmatpush.bf16.msra.mxu0 %v428
    %596 = vmatpush.bf16.msra.mxu0 %v424
    %597 = vmatpush.bf16.msra.mxu0 %v420
    %598 = vmatpush.bf16.msra.mxu0 %v416
    %599 = vmatpush.bf16.msra.mxu0 %v412
    %600 = vmatpush.bf16.msra.mxu0 %v408
    %601 = vmatpush.bf16.msra.mxu0 %v404
    %602 = vmatpush.bf16.msra.mxu0 %v400
    %603 = vmatmul.bf16.gmra.mxu0 %v555
    %v604 = vpop.f32.mrf.mxu0
    %v605 = vadd.f32 0.0, %v604
    %v606 = vpop.f32.mrf.mxu0
    %607 = vdwg.mxu0
    %v608 = vadd.f32 %v551, %v566
    %v609 = vadd.f32 %v552, %v579
    %v610 = vadd.f32 %v553, %v592
    %v611 = vadd.f32 %v554, %v605
    %v612 = vmul.f32 %v608, 0.5
    %v613 = vtanh.pop %v612
    %v614 = vmul.f32 %v613, 0.5
    %v615 = vadd.f32 %v614, 0.5
    %v616 = vmul.f32 %v609, 0.5
    %v617 = vtanh.pop %v616
    %v618 = vmul.f32 %v617, 0.5
    %v619 = vadd.f32 %v618, 0.5
    %v620 = vtanh.pop %v610
    %v621 = vmul.f32 %v611, 0.5
    %v622 = vtanh.pop %v621
    %v623 = vmul.f32 %v622, 0.5
    %v624 = vadd.f32 %v623, 0.5
    %v625 = vmul.f32 %v619, %v547
    %v626 = vmul.f32 %v615, %v620
    %v627 = vadd.f32 %v625, %v626
    %v628 = vtanh.pop %v627
    %v629 = vmul.f32 %v624, %v628
    %s630 = sadd.s32 %s23, 1
    %v631 = vstv %s630
    %vm632 = vcmp.gt.s32.totalorder %v258, %v631
    %v633 = vsel %vm632, 1, 0
    %634 = vset.pattern.permute.xlu0 0
    %635 = vperm.xlu0 %634, %v633
    %v636 = vpop.permute.xlu0 %635
    %vm637 = vcmp.eq.s32.totalorder %v636, 1
    %v638 = vsel %vm637, %v629, %v546
    %639 = vst [vmem:[#allocation2] sm:$0xff] %v638
    %v640 = vsel %vm637, %v627, %v547
    %641 = vst [vmem:[#allocation3] sm:$0xff] %v640
    %v642 = vld [vmem:[#allocation2] sm:$0xff]
    %v643 = vld [vmem:[#allocation3] sm:$0xff]
    %s644 = smul.u32 2, 4
    %s645 = smul.addr %s644, 8
    %s646 = scalar_lea.vmem [#allocation4], %s645
    %v647 = vld [vmem:[%s646] sm:$0xff]
    %v648 = vld [vmem:[%s646 + $0x8] sm:$0xff]
    %v649 = vld [vmem:[%s646 + $0x10] sm:$0xff]
    %v650 = vld [vmem:[%s646 + $0x18] sm:$0xff]
    %v651 = vpack.c.bf16 %v642, %v642
    %652 = vmatpush.bf16.msra.mxu0 %v425
    %653 = vmatpush.bf16.msra.mxu0 %v421
    %654 = vmatpush.bf16.msra.mxu0 %v417
    %655 = vmatpush.bf16.msra.mxu0 %v413
    %656 = vmatpush.bf16.msra.mxu0 %v409
    %657 = vmatpush.bf16.msra.mxu0 %v405
    %658 = vmatpush.bf16.msra.mxu0 %v401
    %659 = vmatpush.bf16.msra.mxu0 %v397
    %660 = vmatmul.bf16.gmra.mxu0 %v651
    %v661 = vpop.f32.mrf.mxu0
    %v662 = vadd.f32 0.0, %v661
    %v663 = vpop.f32.mrf.mxu0
    %664 = vdwg.mxu0
    %665 = vmatpush.bf16.msra.mxu0 %v426
    %666 = vmatpush.bf16.msra.mxu0 %v422
    %667 = vmatpush.bf16.msra.mxu0 %v418
    %668 = vmatpush.bf16.msra.mxu0 %v414
    %669 = vmatpush.bf16.msra.mxu0 %v410
    %670 = vmatpush.bf16.msra.mxu0 %v406
    %671 = vmatpush.bf16.msra.mxu0 %v402
    %672 = vmatpush.bf16.msra.mxu0 %v398
    %673 = vmatmul.bf16.gmra.mxu0 %v651
    %v674 = vpop.f32.mrf.mxu0
    %v675 = vadd.f32 0.0, %v674
    %v676 = vpop.f32.mrf.mxu0
    %677 = vdwg.mxu0
    %678 = vmatpush.bf16.msra.mxu0 %v427
    %679 = vmatpush.bf16.msra.mxu0 %v423
    %680 = vmatpush.bf16.msra.mxu0 %v419
    %681 = vmatpush.bf16.msra.mxu0 %v415
    %682 = vmatpush.bf16.msra.mxu0 %v411
    %683 = vmatpush.bf16.msra.mxu0 %v407
    %684 = vmatpush.bf16.msra.mxu0 %v403
    %685 = vmatpush.bf16.msra.mxu0 %v399
    %686 = vmatmul.bf16.gmra.mxu0 %v651
    %v687 = vpop.f32.mrf.mxu0
    %v688 = vadd.f32 0.0, %v687
    %v689 = vpop.f32.mrf.mxu0
    %690 = vdwg.mxu0
    %691 = vmatpush.bf16.msra.mxu0 %v428
    %692 = vmatpush.bf16.msra.mxu0 %v424
    %693 = vmatpush.bf16.msra.mxu0 %v420
    %694 = vmatpush.bf16.msra.mxu0 %v416
    %695 = vmatpush.bf16.msra.mxu0 %v412
    %696 = vmatpush.bf16.msra.mxu0 %v408
    %697 = vmatpush.bf16.msra.mxu0 %v404
    %698 = vmatpush.bf16.msra.mxu0 %v400
    %699 = vmatmul.bf16.gmra.mxu0 %v651
    %v700 = vpop.f32.mrf.mxu0
    %v701 = vadd.f32 0.0, %v700
    %v702 = vpop.f32.mrf.mxu0
    %703 = vdwg.mxu0
    %v704 = vadd.f32 %v647, %v662
    %v705 = vadd.f32 %v648, %v675
    %v706 = vadd.f32 %v649, %v688
    %v707 = vadd.f32 %v650, %v701
    %v708 = vmul.f32 %v704, 0.5
    %v709 = vtanh.pop %v708
    %v710 = vmul.f32 %v709, 0.5
    %v711 = vadd.f32 %v710, 0.5
    %v712 = vmul.f32 %v705, 0.5
    %v713 = vtanh.pop %v712
    %v714 = vmul.f32 %v713, 0.5
    %v715 = vadd.f32 %v714, 0.5
    %v716 = vtanh.pop %v706
    %v717 = vmul.f32 %v707, 0.5
    %v718 = vtanh.pop %v717
    %v719 = vmul.f32 %v718, 0.5
    %v720 = vadd.f32 %v719, 0.5
    %v721 = vmul.f32 %v715, %v643
    %v722 = vmul.f32 %v711, %v716
    %v723 = vadd.f32 %v721, %v722
    %v724 = vtanh.pop %v723
    %v725 = vmul.f32 %v720, %v724
    %s726 = sadd.s32 %s23, 2
    %v727 = vstv %s726
    %vm728 = vcmp.gt.s32.totalorder %v258, %v727
    %v729 = vsel %vm728, 1, 0
    %730 = vset.pattern.permute.xlu0 0
    %731 = vperm.xlu0 %730, %v729
    %v732 = vpop.permute.xlu0 %731
    %vm733 = vcmp.eq.s32.totalorder %v732, 1
    %v734 = vsel %vm733, %v725, %v642
    %735 = vst [vmem:[#allocation2] sm:$0xff] %v734
    %v736 = vsel %vm733, %v723, %v643
    %737 = vst [vmem:[#allocation3] sm:$0xff] %v736
    %v738 = vld [vmem:[#allocation2] sm:$0xff]
    %v739 = vld [vmem:[#allocation3] sm:$0xff]
    %s740 = smul.u32 3, 4
    %s741 = smul.addr %s740, 8
    %s742 = scalar_lea.vmem [#allocation4], %s741
    %v743 = vld [vmem:[%s742] sm:$0xff]
    %v744 = vld [vmem:[%s742 + $0x8] sm:$0xff]
    %v745 = vld [vmem:[%s742 + $0x10] sm:$0xff]
    %v746 = vld [vmem:[%s742 + $0x18] sm:$0xff]
    %v747 = vpack.c.bf16 %v738, %v738
    %748 = vmatpush.bf16.msra.mxu0 %v425
    %749 = vmatpush.bf16.msra.mxu0 %v421
    %750 = vmatpush.bf16.msra.mxu0 %v417
    %751 = vmatpush.bf16.msra.mxu0 %v413
    %752 = vmatpush.bf16.msra.mxu0 %v409
    %753 = vmatpush.bf16.msra.mxu0 %v405
    %754 = vmatpush.bf16.msra.mxu0 %v401
    %755 = vmatpush.bf16.msra.mxu0 %v397
    %756 = vmatmul.bf16.gmra.mxu0 %v747
    %v757 = vpop.f32.mrf.mxu0
    %v758 = vadd.f32 0.0, %v757
    %v759 = vpop.f32.mrf.mxu0
    %760 = vdwg.mxu0
    %761 = vmatpush.bf16.msra.mxu0 %v426
    %762 = vmatpush.bf16.msra.mxu0 %v422
    %763 = vmatpush.bf16.msra.mxu0 %v418
    %764 = vmatpush.bf16.msra.mxu0 %v414
    %765 = vmatpush.bf16.msra.mxu0 %v410
    %766 = vmatpush.bf16.msra.mxu0 %v406
    %767 = vmatpush.bf16.msra.mxu0 %v402
    %768 = vmatpush.bf16.msra.mxu0 %v398
    %769 = vmatmul.bf16.gmra.mxu0 %v747
    %v770 = vpop.f32.mrf.mxu0
    %v771 = vadd.f32 0.0, %v770
    %v772 = vpop.f32.mrf.mxu0
    %773 = vdwg.mxu0
    %774 = vmatpush.bf16.msra.mxu0 %v427
    %775 = vmatpush.bf16.msra.mxu0 %v423
    %776 = vmatpush.bf16.msra.mxu0 %v419
    %777 = vmatpush.bf16.msra.mxu0 %v415
    %778 = vmatpush.bf16.msra.mxu0 %v411
    %779 = vmatpush.bf16.msra.mxu0 %v407
    %780 = vmatpush.bf16.msra.mxu0 %v403
    %781 = vmatpush.bf16.msra.mxu0 %v399
    %782 = vmatmul.bf16.gmra.mxu0 %v747
    %v783 = vpop.f32.mrf.mxu0
    %v784 = vadd.f32 0.0, %v783
    %v785 = vpop.f32.mrf.mxu0
    %786 = vdwg.mxu0
    %787 = vmatpush.bf16.msra.mxu0 %v428
    %788 = vmatpush.bf16.msra.mxu0 %v424
    %789 = vmatpush.bf16.msra.mxu0 %v420
    %790 = vmatpush.bf16.msra.mxu0 %v416
    %791 = vmatpush.bf16.msra.mxu0 %v412
    %792 = vmatpush.bf16.msra.mxu0 %v408
    %793 = vmatpush.bf16.msra.mxu0 %v404
    %794 = vmatpush.bf16.msra.mxu0 %v400
    %795 = vmatmul.bf16.gmra.mxu0 %v747
    %v796 = vpop.f32.mrf.mxu0
    %v797 = vadd.f32 0.0, %v796
    %v798 = vpop.f32.mrf.mxu0
    %799 = vdwg.mxu0
    %v800 = vadd.f32 %v743, %v758
    %v801 = vadd.f32 %v744, %v771
    %v802 = vadd.f32 %v745, %v784
    %v803 = vadd.f32 %v746, %v797
    %v804 = vmul.f32 %v800, 0.5
    %v805 = vtanh.pop %v804
    %v806 = vmul.f32 %v805, 0.5
    %v807 = vadd.f32 %v806, 0.5
    %v808 = vmul.f32 %v801, 0.5
    %v809 = vtanh.pop %v808
    %v810 = vmul.f32 %v809, 0.5
    %v811 = vadd.f32 %v810, 0.5
    %v812 = vtanh.pop %v802
    %v813 = vmul.f32 %v803, 0.5
    %v814 = vtanh.pop %v813
    %v815 = vmul.f32 %v814, 0.5
    %v816 = vadd.f32 %v815, 0.5
    %v817 = vmul.f32 %v811, %v739
    %v818 = vmul.f32 %v807, %v812
    %v819 = vadd.f32 %v817, %v818
    %v820 = vtanh.pop %v819
    %v821 = vmul.f32 %v816, %v820
    %s822 = sadd.s32 %s23, 3
    %v823 = vstv %s822
    %vm824 = vcmp.gt.s32.totalorder %v258, %v823
    %v825 = vsel %vm824, 1, 0
    %826 = vset.pattern.permute.xlu0 0
    %827 = vperm.xlu0 %826, %v825
    %v828 = vpop.permute.xlu0 %827
    %vm829 = vcmp.eq.s32.totalorder %v828, 1
    %v830 = vsel %vm829, %v821, %v738
    %831 = vst [vmem:[#allocation2] sm:$0xff] %v830
    %v832 = vsel %vm829, %v819, %v739
    %833 = vst [vmem:[#allocation3] sm:$0xff] %v832
    %v834 = vld [vmem:[#allocation2] sm:$0xff]
    %v835 = vld [vmem:[#allocation3] sm:$0xff]
    %s836 = smul.u32 4, 4
    %s837 = smul.addr %s836, 8
    %s838 = scalar_lea.vmem [#allocation4], %s837
    %v839 = vld [vmem:[%s838] sm:$0xff]
    %v840 = vld [vmem:[%s838 + $0x8] sm:$0xff]
    %v841 = vld [vmem:[%s838 + $0x10] sm:$0xff]
    %v842 = vld [vmem:[%s838 + $0x18] sm:$0xff]
    %v843 = vpack.c.bf16 %v834, %v834
    %844 = vmatpush.bf16.msra.mxu0 %v425
    %845 = vmatpush.bf16.msra.mxu0 %v421
    %846 = vmatpush.bf16.msra.mxu0 %v417
    %847 = vmatpush.bf16.msra.mxu0 %v413
    %848 = vmatpush.bf16.msra.mxu0 %v409
    %849 = vmatpush.bf16.msra.mxu0 %v405
    %850 = vmatpush.bf16.msra.mxu0 %v401
    %851 = vmatpush.bf16.msra.mxu0 %v397
    %852 = vmatmul.bf16.gmra.mxu0 %v843
    %v853 = vpop.f32.mrf.mxu0
    %v854 = vadd.f32 0.0, %v853
    %v855 = vpop.f32.mrf.mxu0
    %856 = vdwg.mxu0
    %857 = vmatpush.bf16.msra.mxu0 %v426
    %858 = vmatpush.bf16.msra.mxu0 %v422
    %859 = vmatpush.bf16.msra.mxu0 %v418
    %860 = vmatpush.bf16.msra.mxu0 %v414
    %861 = vmatpush.bf16.msra.mxu0 %v410
    %862 = vmatpush.bf16.msra.mxu0 %v406
    %863 = vmatpush.bf16.msra.mxu0 %v402
    %864 = vmatpush.bf16.msra.mxu0 %v398
    %865 = vmatmul.bf16.gmra.mxu0 %v843
    %v866 = vpop.f32.mrf.mxu0
    %v867 = vadd.f32 0.0, %v866
    %v868 = vpop.f32.mrf.mxu0
    %869 = vdwg.mxu0
    %870 = vmatpush.bf16.msra.mxu0 %v427
    %871 = vmatpush.bf16.msra.mxu0 %v423
    %872 = vmatpush.bf16.msra.mxu0 %v419
    %873 = vmatpush.bf16.msra.mxu0 %v415
    %874 = vmatpush.bf16.msra.mxu0 %v411
    %875 = vmatpush.bf16.msra.mxu0 %v407
    %876 = vmatpush.bf16.msra.mxu0 %v403
    %877 = vmatpush.bf16.msra.mxu0 %v399
    %878 = vmatmul.bf16.gmra.mxu0 %v843
    %v879 = vpop.f32.mrf.mxu0
    %v880 = vadd.f32 0.0, %v879
    %v881 = vpop.f32.mrf.mxu0
    %882 = vdwg.mxu0
    %883 = vmatpush.bf16.msra.mxu0 %v428
    %884 = vmatpush.bf16.msra.mxu0 %v424
    %885 = vmatpush.bf16.msra.mxu0 %v420
    %886 = vmatpush.bf16.msra.mxu0 %v416
    %887 = vmatpush.bf16.msra.mxu0 %v412
    %888 = vmatpush.bf16.msra.mxu0 %v408
    %889 = vmatpush.bf16.msra.mxu0 %v404
    %890 = vmatpush.bf16.msra.mxu0 %v400
    %891 = vmatmul.bf16.gmra.mxu0 %v843
    %v892 = vpop.f32.mrf.mxu0
    %v893 = vadd.f32 0.0, %v892
    %v894 = vpop.f32.mrf.mxu0
    %895 = vdwg.mxu0
    %v896 = vadd.f32 %v839, %v854
    %v897 = vadd.f32 %v840, %v867
    %v898 = vadd.f32 %v841, %v880
    %v899 = vadd.f32 %v842, %v893
    %v900 = vmul.f32 %v896, 0.5
    %v901 = vtanh.pop %v900
    %v902 = vmul.f32 %v901, 0.5
    %v903 = vadd.f32 %v902, 0.5
    %v904 = vmul.f32 %v897, 0.5
    %v905 = vtanh.pop %v904
    %v906 = vmul.f32 %v905, 0.5
    %v907 = vadd.f32 %v906, 0.5
    %v908 = vtanh.pop %v898
    %v909 = vmul.f32 %v899, 0.5
    %v910 = vtanh.pop %v909
    %v911 = vmul.f32 %v910, 0.5
    %v912 = vadd.f32 %v911, 0.5
    %v913 = vmul.f32 %v907, %v835
    %v914 = vmul.f32 %v903, %v908
    %v915 = vadd.f32 %v913, %v914
    %v916 = vtanh.pop %v915
    %v917 = vmul.f32 %v912, %v916
    %s918 = sadd.s32 %s23, 4
    %v919 = vstv %s918
    %vm920 = vcmp.gt.s32.totalorder %v258, %v919
    %v921 = vsel %vm920, 1, 0
    %922 = vset.pattern.permute.xlu0 0
    %923 = vperm.xlu0 %922, %v921
    %v924 = vpop.permute.xlu0 %923
    %vm925 = vcmp.eq.s32.totalorder %v924, 1
    %v926 = vsel %vm925, %v917, %v834
    %927 = vst [vmem:[#allocation2] sm:$0xff] %v926
    %v928 = vsel %vm925, %v915, %v835
    %929 = vst [vmem:[#allocation3] sm:$0xff] %v928
    %v930 = vld [vmem:[#allocation2] sm:$0xff]
    %v931 = vld [vmem:[#allocation3] sm:$0xff]
    %s932 = smul.u32 5, 4
    %s933 = smul.addr %s932, 8
    %s934 = scalar_lea.vmem [#allocation4], %s933
    %v935 = vld [vmem:[%s934] sm:$0xff]
    %v936 = vld [vmem:[%s934 + $0x8] sm:$0xff]
    %v937 = vld [vmem:[%s934 + $0x10] sm:$0xff]
    %v938 = vld [vmem:[%s934 + $0x18] sm:$0xff]
    %v939 = vpack.c.bf16 %v930, %v930
    %940 = vmatpush.bf16.msra.mxu0 %v425
    %941 = vmatpush.bf16.msra.mxu0 %v421
    %942 = vmatpush.bf16.msra.mxu0 %v417
    %943 = vmatpush.bf16.msra.mxu0 %v413
    %944 = vmatpush.bf16.msra.mxu0 %v409
    %945 = vmatpush.bf16.msra.mxu0 %v405
    %946 = vmatpush.bf16.msra.mxu0 %v401
    %947 = vmatpush.bf16.msra.mxu0 %v397
    %948 = vmatmul.bf16.gmra.mxu0 %v939
    %v949 = vpop.f32.mrf.mxu0
    %v950 = vadd.f32 0.0, %v949
    %v951 = vpop.f32.mrf.mxu0
    %952 = vdwg.mxu0
    %953 = vmatpush.bf16.msra.mxu0 %v426
    %954 = vmatpush.bf16.msra.mxu0 %v422
    %955 = vmatpush.bf16.msra.mxu0 %v418
    %956 = vmatpush.bf16.msra.mxu0 %v414
    %957 = vmatpush.bf16.msra.mxu0 %v410
    %958 = vmatpush.bf16.msra.mxu0 %v406
    %959 = vmatpush.bf16.msra.mxu0 %v402
    %960 = vmatpush.bf16.msra.mxu0 %v398
    %961 = vmatmul.bf16.gmra.mxu0 %v939
    %v962 = vpop.f32.mrf.mxu0
    %v963 = vadd.f32 0.0, %v962
    %v964 = vpop.f32.mrf.mxu0
    %965 = vdwg.mxu0
    %966 = vmatpush.bf16.msra.mxu0 %v427
    %967 = vmatpush.bf16.msra.mxu0 %v423
    %968 = vmatpush.bf16.msra.mxu0 %v419
    %969 = vmatpush.bf16.msra.mxu0 %v415
    %970 = vmatpush.bf16.msra.mxu0 %v411
    %971 = vmatpush.bf16.msra.mxu0 %v407
    %972 = vmatpush.bf16.msra.mxu0 %v403
    %973 = vmatpush.bf16.msra.mxu0 %v399
    %974 = vmatmul.bf16.gmra.mxu0 %v939
    %v975 = vpop.f32.mrf.mxu0
    %v976 = vadd.f32 0.0, %v975
    %v977 = vpop.f32.mrf.mxu0
    %978 = vdwg.mxu0
    %979 = vmatpush.bf16.msra.mxu0 %v428
    %980 = vmatpush.bf16.msra.mxu0 %v424
    %981 = vmatpush.bf16.msra.mxu0 %v420
    %982 = vmatpush.bf16.msra.mxu0 %v416
    %983 = vmatpush.bf16.msra.mxu0 %v412
    %984 = vmatpush.bf16.msra.mxu0 %v408
    %985 = vmatpush.bf16.msra.mxu0 %v404
    %986 = vmatpush.bf16.msra.mxu0 %v400
    %987 = vmatmul.bf16.gmra.mxu0 %v939
    %v988 = vpop.f32.mrf.mxu0
    %v989 = vadd.f32 0.0, %v988
    %v990 = vpop.f32.mrf.mxu0
    %991 = vdwg.mxu0
    %v992 = vadd.f32 %v935, %v950
    %v993 = vadd.f32 %v936, %v963
    %v994 = vadd.f32 %v937, %v976
    %v995 = vadd.f32 %v938, %v989
    %v996 = vmul.f32 %v992, 0.5
    %v997 = vtanh.pop %v996
    %v998 = vmul.f32 %v997, 0.5
    %v999 = vadd.f32 %v998, 0.5
    %v1000 = vmul.f32 %v993, 0.5
    %v1001 = vtanh.pop %v1000
    %v1002 = vmul.f32 %v1001, 0.5
    %v1003 = vadd.f32 %v1002, 0.5
    %v1004 = vtanh.pop %v994
    %v1005 = vmul.f32 %v995, 0.5
    %v1006 = vtanh.pop %v1005
    %v1007 = vmul.f32 %v1006, 0.5
    %v1008 = vadd.f32 %v1007, 0.5
    %v1009 = vmul.f32 %v1003, %v931
    %v1010 = vmul.f32 %v999, %v1004
    %v1011 = vadd.f32 %v1009, %v1010
    %v1012 = vtanh.pop %v1011
    %v1013 = vmul.f32 %v1008, %v1012
    %s1014 = sadd.s32 %s23, 5
    %v1015 = vstv %s1014
    %vm1016 = vcmp.gt.s32.totalorder %v258, %v1015
    %v1017 = vsel %vm1016, 1, 0
    %1018 = vset.pattern.permute.xlu0 0
    %1019 = vperm.xlu0 %1018, %v1017
    %v1020 = vpop.permute.xlu0 %1019
    %vm1021 = vcmp.eq.s32.totalorder %v1020, 1
    %v1022 = vsel %vm1021, %v1013, %v930
    %1023 = vst [vmem:[#allocation2] sm:$0xff] %v1022
    %v1024 = vsel %vm1021, %v1011, %v931
    %1025 = vst [vmem:[#allocation3] sm:$0xff] %v1024
    %v1026 = vld [vmem:[#allocation2] sm:$0xff]
    %v1027 = vld [vmem:[#allocation3] sm:$0xff]
    %s1028 = smul.u32 6, 4
    %s1029 = smul.addr %s1028, 8
    %s1030 = scalar_lea.vmem [#allocation4], %s1029
    %v1031 = vld [vmem:[%s1030] sm:$0xff]
    %v1032 = vld [vmem:[%s1030 + $0x8] sm:$0xff]
    %v1033 = vld [vmem:[%s1030 + $0x10] sm:$0xff]
    %v1034 = vld [vmem:[%s1030 + $0x18] sm:$0xff]
    %v1035 = vpack.c.bf16 %v1026, %v1026
    %1036 = vmatpush.bf16.msra.mxu0 %v425
    %1037 = vmatpush.bf16.msra.mxu0 %v421
    %1038 = vmatpush.bf16.msra.mxu0 %v417
    %1039 = vmatpush.bf16.msra.mxu0 %v413
    %1040 = vmatpush.bf16.msra.mxu0 %v409
    %1041 = vmatpush.bf16.msra.mxu0 %v405
    %1042 = vmatpush.bf16.msra.mxu0 %v401
    %1043 = vmatpush.bf16.msra.mxu0 %v397
    %1044 = vmatmul.bf16.gmra.mxu0 %v1035
    %v1045 = vpop.f32.mrf.mxu0
    %v1046 = vadd.f32 0.0, %v1045
    %v1047 = vpop.f32.mrf.mxu0
    %1048 = vdwg.mxu0
    %1049 = vmatpush.bf16.msra.mxu0 %v426
    %1050 = vmatpush.bf16.msra.mxu0 %v422
    %1051 = vmatpush.bf16.msra.mxu0 %v418
    %1052 = vmatpush.bf16.msra.mxu0 %v414
    %1053 = vmatpush.bf16.msra.mxu0 %v410
    %1054 = vmatpush.bf16.msra.mxu0 %v406
    %1055 = vmatpush.bf16.msra.mxu0 %v402
    %1056 = vmatpush.bf16.msra.mxu0 %v398
    %1057 = vmatmul.bf16.gmra.mxu0 %v1035
    %v1058 = vpop.f32.mrf.mxu0
    %v1059 = vadd.f32 0.0, %v1058
    %v1060 = vpop.f32.mrf.mxu0
    %1061 = vdwg.mxu0
    %1062 = vmatpush.bf16.msra.mxu0 %v427
    %1063 = vmatpush.bf16.msra.mxu0 %v423
    %1064 = vmatpush.bf16.msra.mxu0 %v419
    %1065 = vmatpush.bf16.msra.mxu0 %v415
    %1066 = vmatpush.bf16.msra.mxu0 %v411
    %1067 = vmatpush.bf16.msra.mxu0 %v407
    %1068 = vmatpush.bf16.msra.mxu0 %v403
    %1069 = vmatpush.bf16.msra.mxu0 %v399
    %1070 = vmatmul.bf16.gmra.mxu0 %v1035
    %v1071 = vpop.f32.mrf.mxu0
    %v1072 = vadd.f32 0.0, %v1071
    %v1073 = vpop.f32.mrf.mxu0
    %1074 = vdwg.mxu0
    %1075 = vmatpush.bf16.msra.mxu0 %v428
    %1076 = vmatpush.bf16.msra.mxu0 %v424
    %1077 = vmatpush.bf16.msra.mxu0 %v420
    %1078 = vmatpush.bf16.msra.mxu0 %v416
    %1079 = vmatpush.bf16.msra.mxu0 %v412
    %1080 = vmatpush.bf16.msra.mxu0 %v408
    %1081 = vmatpush.bf16.msra.mxu0 %v404
    %1082 = vmatpush.bf16.msra.mxu0 %v400
    %1083 = vmatmul.bf16.gmra.mxu0 %v1035
    %v1084 = vpop.f32.mrf.mxu0
    %v1085 = vadd.f32 0.0, %v1084
    %v1086 = vpop.f32.mrf.mxu0
    %1087 = vdwg.mxu0
    %v1088 = vadd.f32 %v1031, %v1046
    %v1089 = vadd.f32 %v1032, %v1059
    %v1090 = vadd.f32 %v1033, %v1072
    %v1091 = vadd.f32 %v1034, %v1085
    %v1092 = vmul.f32 %v1088, 0.5
    %v1093 = vtanh.pop %v1092
    %v1094 = vmul.f32 %v1093, 0.5
    %v1095 = vadd.f32 %v1094, 0.5
    %v1096 = vmul.f32 %v1089, 0.5
    %v1097 = vtanh.pop %v1096
    %v1098 = vmul.f32 %v1097, 0.5
    %v1099 = vadd.f32 %v1098, 0.5
    %v1100 = vtanh.pop %v1090
    %v1101 = vmul.f32 %v1091, 0.5
    %v1102 = vtanh.pop %v1101
    %v1103 = vmul.f32 %v1102, 0.5
    %v1104 = vadd.f32 %v1103, 0.5
    %v1105 = vmul.f32 %v1099, %v1027
    %v1106 = vmul.f32 %v1095, %v1100
    %v1107 = vadd.f32 %v1105, %v1106
    %v1108 = vtanh.pop %v1107
    %v1109 = vmul.f32 %v1104, %v1108
    %s1110 = sadd.s32 %s23, 6
    %v1111 = vstv %s1110
    %vm1112 = vcmp.gt.s32.totalorder %v258, %v1111
    %v1113 = vsel %vm1112, 1, 0
    %1114 = vset.pattern.permute.xlu0 0
    %1115 = vperm.xlu0 %1114, %v1113
    %v1116 = vpop.permute.xlu0 %1115
    %vm1117 = vcmp.eq.s32.totalorder %v1116, 1
    %v1118 = vsel %vm1117, %v1109, %v1026
    %1119 = vst [vmem:[#allocation2] sm:$0xff] %v1118
    %v1120 = vsel %vm1117, %v1107, %v1027
    %1121 = vst [vmem:[#allocation3] sm:$0xff] %v1120
    %v1122 = vld [vmem:[#allocation2] sm:$0xff]
    %v1123 = vld [vmem:[#allocation3] sm:$0xff]
    %s1124 = smul.u32 7, 4
    %s1125 = smul.addr %s1124, 8
    %s1126 = scalar_lea.vmem [#allocation4], %s1125
    %v1127 = vld [vmem:[%s1126] sm:$0xff]
    %v1128 = vld [vmem:[%s1126 + $0x8] sm:$0xff]
    %v1129 = vld [vmem:[%s1126 + $0x10] sm:$0xff]
    %v1130 = vld [vmem:[%s1126 + $0x18] sm:$0xff]
    %v1131 = vpack.c.bf16 %v1122, %v1122
    %1132 = vmatpush.bf16.msra.mxu0 %v425
    %1133 = vmatpush.bf16.msra.mxu0 %v421
    %1134 = vmatpush.bf16.msra.mxu0 %v417
    %1135 = vmatpush.bf16.msra.mxu0 %v413
    %1136 = vmatpush.bf16.msra.mxu0 %v409
    %1137 = vmatpush.bf16.msra.mxu0 %v405
    %1138 = vmatpush.bf16.msra.mxu0 %v401
    %1139 = vmatpush.bf16.msra.mxu0 %v397
    %1140 = vmatmul.bf16.gmra.mxu0 %v1131
    %v1141 = vpop.f32.mrf.mxu0
    %v1142 = vadd.f32 0.0, %v1141
    %v1143 = vpop.f32.mrf.mxu0
    %1144 = vdwg.mxu0
    %1145 = vmatpush.bf16.msra.mxu0 %v426
    %1146 = vmatpush.bf16.msra.mxu0 %v422
    %1147 = vmatpush.bf16.msra.mxu0 %v418
    %1148 = vmatpush.bf16.msra.mxu0 %v414
    %1149 = vmatpush.bf16.msra.mxu0 %v410
    %1150 = vmatpush.bf16.msra.mxu0 %v406
    %1151 = vmatpush.bf16.msra.mxu0 %v402
    %1152 = vmatpush.bf16.msra.mxu0 %v398
    %1153 = vmatmul.bf16.gmra.mxu0 %v1131
    %v1154 = vpop.f32.mrf.mxu0
    %v1155 = vadd.f32 0.0, %v1154
    %v1156 = vpop.f32.mrf.mxu0
    %1157 = vdwg.mxu0
    %1158 = vmatpush.bf16.msra.mxu0 %v427
    %1159 = vmatpush.bf16.msra.mxu0 %v423
    %1160 = vmatpush.bf16.msra.mxu0 %v419
    %1161 = vmatpush.bf16.msra.mxu0 %v415
    %1162 = vmatpush.bf16.msra.mxu0 %v411
    %1163 = vmatpush.bf16.msra.mxu0 %v407
    %1164 = vmatpush.bf16.msra.mxu0 %v403
    %1165 = vmatpush.bf16.msra.mxu0 %v399
    %1166 = vmatmul.bf16.gmra.mxu0 %v1131
    %v1167 = vpop.f32.mrf.mxu0
    %v1168 = vadd.f32 0.0, %v1167
    %v1169 = vpop.f32.mrf.mxu0
    %1170 = vdwg.mxu0
    %1171 = vmatpush.bf16.msra.mxu0 %v428
    %1172 = vmatpush.bf16.msra.mxu0 %v424
    %1173 = vmatpush.bf16.msra.mxu0 %v420
    %1174 = vmatpush.bf16.msra.mxu0 %v416
    %1175 = vmatpush.bf16.msra.mxu0 %v412
    %1176 = vmatpush.bf16.msra.mxu0 %v408
    %1177 = vmatpush.bf16.msra.mxu0 %v404
    %1178 = vmatpush.bf16.msra.mxu0 %v400
    %1179 = vmatmul.bf16.gmra.mxu0 %v1131
    %v1180 = vpop.f32.mrf.mxu0
    %v1181 = vadd.f32 0.0, %v1180
    %v1182 = vpop.f32.mrf.mxu0
    %1183 = vdwg.mxu0
    %v1184 = vadd.f32 %v1127, %v1142
    %v1185 = vadd.f32 %v1128, %v1155
    %v1186 = vadd.f32 %v1129, %v1168
    %v1187 = vadd.f32 %v1130, %v1181
    %v1188 = vmul.f32 %v1184, 0.5
    %v1189 = vtanh.pop %v1188
    %v1190 = vmul.f32 %v1189, 0.5
    %v1191 = vadd.f32 %v1190, 0.5
    %v1192 = vmul.f32 %v1185, 0.5
    %v1193 = vtanh.pop %v1192
    %v1194 = vmul.f32 %v1193, 0.5
    %v1195 = vadd.f32 %v1194, 0.5
    %v1196 = vtanh.pop %v1186
    %v1197 = vmul.f32 %v1187, 0.5
    %v1198 = vtanh.pop %v1197
    %v1199 = vmul.f32 %v1198, 0.5
    %v1200 = vadd.f32 %v1199, 0.5
    %v1201 = vmul.f32 %v1195, %v1123
    %v1202 = vmul.f32 %v1191, %v1196
    %v1203 = vadd.f32 %v1201, %v1202
    %v1204 = vtanh.pop %v1203
    %v1205 = vmul.f32 %v1200, %v1204
    %s1206 = sadd.s32 %s23, 7
    %v1207 = vstv %s1206
    %vm1208 = vcmp.gt.s32.totalorder %v258, %v1207
    %v1209 = vsel %vm1208, 1, 0
    %1210 = vset.pattern.permute.xlu0 0
    %1211 = vperm.xlu0 %1210, %v1209
    %v1212 = vpop.permute.xlu0 %1211
    %vm1213 = vcmp.eq.s32.totalorder %v1212, 1
    %v1214 = vsel %vm1213, %v1205, %v1122
    %1215 = vst [vmem:[#allocation2] sm:$0xff] %v1214
    %v1216 = vsel %vm1213, %v1203, %v1123
    %1217 = vst [vmem:[#allocation3] sm:$0xff] %v1216
  $region29: #{lstm_classifier_forward.1} parent=0 // pred_fallthru
    _
  // Predicated region
  $region30: #{lstm_classifier_forward.1} parent=0 // pred_check
    %p1218 = pneg %p24
  $region31: #{lstm_classifier_forward.1} parent=0 // pred_check_branch
    %1220 = sbr.rel (%p1218) target = $region33
  $region32: #{lstm_classifier_forward.1} parent=0 // pred_region
    %v1221 = vld [vmem:[#allocation2] sm:$0xff]
    %1222 = vst [vmem:[%s6] sm:$0xff] %v1221
  $region33: #{lstm_classifier_forward.1} parent=0 // pred_fallthru
    _
  // Predicated region
  $region34: #{lstm_classifier_forward.1} parent=0 // pred_check
    _
  $region35: #{lstm_classifier_forward.1} parent=0 // pred_check_branch
    %1224 = sbr.rel (0) target = $region37
  $region36: #{lstm_classifier_forward.1} parent=0 // pred_region
    _
  $region37: #{lstm_classifier_forward.1} parent=0 // pred_fallthru
    _
  // Predicated region
  $region38: #{lstm_classifier_forward.1} parent=0 // pred_check
    _
  $region39: #{lstm_classifier_forward.1} parent=0 // pred_check_branch
    %1226 = sbr.rel (0) target = $region41
  $region40: #{lstm_classifier_forward.1} parent=0 // pred_region
    _
  $region41: #{lstm_classifier_forward.1} parent=0 // pred_fallthru
    _

</llo_original>
